<compile_context>
chip_gen: v6e
topology: v6e:2x2x1
jax: 0.10.0
libtpu: 0.0.40
codegen_flags: <defaults>
</compile_context>

<pallas_src>
from functools import partial

import jax
import jax.numpy as jnp
from jax.experimental import pallas as pl
from jax.experimental.pallas import tpu as pltpu

FC_OUT = 256  # fc1 output size / GRU input size (fixed by the module spec)


def body_kernel(x_ref, w1_ref, b1_ref, wih_ref, bih_ref, whh_ref, bhh_ref,
                out_ref, fc1_ref, *, B, T, H, HP):
    """Single invocation: whole batch, whole sequence, everything in VMEM.

    x_ref:   (T*B, F)      time-major flattened input, f32
    w1_ref:  (F, 256)      fc1 weight^T, bf16
    b1_ref:  (1, 256)      fc1 bias, f32
    wih_ref: (256, 3*HP)   GRU W_ih^T, gate-padded (r|z|n each HP lanes), bf16
    bih_ref: (1, 3*HP)     GRU b_ih, gate-padded, f32
    whh_ref: (HP, 3*HP)    GRU W_hh^T, row+gate padded, f32
    bhh_ref: (1, 3*HP)     GRU b_hh, gate-padded, f32
    out_ref: (B, T*H)      GRU outputs, lane-dense (wrapper reshapes to B,T,H)
    fc1_ref: (T*B, 256)    relu(fc1(x)), time-major (wrapper restores B,T,256)
    """
    # fc1 + ReLU: one MXU matmul for all B*T rows (bf16 operands, f32 acc).
    x_bf = x_ref[...].astype(jnp.bfloat16)                     # (T*B, F)
    fc1 = jnp.dot(x_bf, w1_ref[...], preferred_element_type=jnp.float32)
    fc1 = jnp.maximum(fc1 + b1_ref[...], 0.0)                  # (T*B, 256) f32
    fc1_ref[...] = fc1.astype(fc1_ref.dtype)

    # GRU input-to-hidden projections for all timesteps in one matmul.
    gx = jnp.dot(fc1.astype(jnp.bfloat16), wih_ref[...],
                 preferred_element_type=jnp.float32) + bih_ref[...]  # (T*B,3HP)

    whh = whh_ref[...]                                          # (HP, 3*HP)
    bhh = bhh_ref[...]                                           # (1, 3*HP)

    # Sequential recurrence (h_0 = 0, PyTorch gate order r,z,n), unrolled.
    # Padding lanes [H:HP] of h stay exactly 0 (zero-padded weights/biases).
    h = jnp.zeros((B, HP), jnp.float32)
    outs = []
    for t in range(T):
        gh = jnp.dot(h, whh, preferred_element_type=jnp.float32) + bhh  # (B,3HP)
        gxt = gx[t * B:(t + 1) * B, :]                           # (B, 3*HP)
        r = jax.nn.sigmoid(gxt[:, 0:HP] + gh[:, 0:HP])
        z = jax.nn.sigmoid(gxt[:, HP:2 * HP] + gh[:, HP:2 * HP])
        n = jnp.tanh(gxt[:, 2 * HP:3 * HP] + r * gh[:, 2 * HP:3 * HP])
        h = (1.0 - z) * n + z * h
        outs.append(h[:, 0:H])                                   # (B, H)

    # Single lane-dense store of all T timesteps.
    out_ref[...] = jnp.concatenate(outs, axis=1).astype(out_ref.dtype)


def body_forward(conv_op, kparams, hidden_size):
    """conv_op: (B, T, fc_size) float32 -> (output, hidden, fc1_out)."""
    w1_k, b1_k, wih_k, bih_k, whh_k, bhh_k = kparams
    B, T, F = conv_op.shape
    H = hidden_size
    HP = whh_k.shape[0]

    # Time-major flatten so the per-timestep recurrence reads contiguous rows.
    x_tb = jnp.transpose(conv_op, (1, 0, 2)).reshape(T * B, F)

    kernel = partial(body_kernel, B=B, T=T, H=H, HP=HP)
    out_flat, fc1_tb = pl.pallas_call(
        kernel,
        out_shape=(
            jax.ShapeDtypeStruct((B, T * H), jnp.float32),
            jax.ShapeDtypeStruct((T * B, FC_OUT), jnp.float32),
        ),
        grid_spec=pltpu.PrefetchScalarGridSpec(
            num_scalar_prefetch=0,
            grid=(1,),
            in_specs=[
                pl.BlockSpec((T * B, F), lambda i: (0, 0)),
                pl.BlockSpec((F, FC_OUT), lambda i: (0, 0)),
                pl.BlockSpec((1, FC_OUT), lambda i: (0, 0)),
                pl.BlockSpec((FC_OUT, 3 * HP), lambda i: (0, 0)),
                pl.BlockSpec((1, 3 * HP), lambda i: (0, 0)),
                pl.BlockSpec((HP, 3 * HP), lambda i: (0, 0)),
                pl.BlockSpec((1, 3 * HP), lambda i: (0, 0)),
            ],
            out_specs=(
                pl.BlockSpec((B, T * H), lambda i: (0, 0)),
                pl.BlockSpec((T * B, FC_OUT), lambda i: (0, 0)),
            ),
        ),
        compiler_params=pltpu.CompilerParams(
            dimension_semantics=("arbitrary",)),
    )(x_tb, w1_k, b1_k, wih_k, bih_k, whh_k, bhh_k)

    output = out_flat.reshape(B, T, H)
    fc1_out = fc1_tb.reshape(T, B, FC_OUT).transpose(1, 0, 2)
    # num_layers == 1, unidirectional: hidden.transpose_(0,1) == out[:, -1:, :]
    hidden = output[:, -1:, :]
    return output, hidden, fc1_out


def make_body_params(key, fc_size, hidden_size):
    """Raw PyTorch-layout parameters with PyTorch-style uniform init."""
    k1, k2, k3, k4, k5, k6 = jax.random.split(key, 6)
    lim1 = 1.0 / (fc_size ** 0.5)
    w1 = jax.random.uniform(k1, (FC_OUT, fc_size), jnp.float32, -lim1, lim1)
    b1 = jax.random.uniform(k2, (FC_OUT,), jnp.float32, -lim1, lim1)
    limg = 1.0 / (hidden_size ** 0.5)
    wih = jax.random.uniform(k3, (3 * hidden_size, FC_OUT), jnp.float32,
                             -limg, limg)
    whh = jax.random.uniform(k4, (3 * hidden_size, hidden_size), jnp.float32,
                             -limg, limg)
    bih = jax.random.uniform(k5, (3 * hidden_size,), jnp.float32, -limg, limg)
    bhh = jax.random.uniform(k6, (3 * hidden_size,), jnp.float32, -limg, limg)
    return w1, b1, wih, whh, bih, bhh


def prepare_kernel_params(raw, hidden_size):
    """Transpose / lane-pad / cast raw params into the kernel layout."""
    w1, b1, wih, whh, bih, bhh = raw
    H = hidden_size
    HP = ((H + 127) // 128) * 128  # each gate padded to a full lane tile

    def pad_gate_cols(mat_t):      # (K, 3H) -> (K, 3*HP), zero padding
        K = mat_t.shape[0]
        out = jnp.zeros((K, 3 * HP), mat_t.dtype)
        for g in range(3):
            out = out.at[:, g * HP:g * HP + H].set(mat_t[:, g * H:(g + 1) * H])
        return out

    w1_k = jnp.transpose(w1).astype(jnp.bfloat16)                    # (F, 256)
    b1_k = b1.reshape(1, FC_OUT).astype(jnp.float32)
    wih_k = pad_gate_cols(jnp.transpose(wih)).astype(jnp.bfloat16)   # (256,3HP)
    bih_k = pad_gate_cols(bih.reshape(1, -1)).astype(jnp.float32)    # (1, 3HP)
    whh_pad = pad_gate_cols(jnp.transpose(whh)).astype(jnp.float32)  # (H, 3HP)
    whh_k = jnp.zeros((HP, 3 * HP), jnp.float32).at[:H, :].set(whh_pad)
    bhh_k = pad_gate_cols(bhh.reshape(1, -1)).astype(jnp.float32)    # (1, 3HP)
    return w1_k, b1_k, wih_k, bih_k, whh_k, bhh_k


def body_reference(x, raw):
    """Pure-JAX f32 reference of Body.forward (eval semantics)."""
    w1, b1, wih, whh, bih, bhh = raw
    H = whh.shape[1]
    B = x.shape[0]
    fc1 = jax.nn.relu(jnp.einsum('btf,of->bto', x, w1) + b1)

    def step(h, xt):                       # xt: (B, 256)
        gx = xt @ wih.T + bih
        gh = h @ whh.T + bhh
        r = jax.nn.sigmoid(gx[:, :H] + gh[:, :H])
        z = jax.nn.sigmoid(gx[:, H:2 * H] + gh[:, H:2 * H])
        n = jnp.tanh(gx[:, 2 * H:] + r * gh[:, 2 * H:])
        h_new = (1.0 - z) * n + z * h
        return h_new, h_new

    h0 = jnp.zeros((B, H), jnp.float32)
    _, ys = jax.lax.scan(step, h0, jnp.transpose(fc1, (1, 0, 2)))
    out = jnp.transpose(ys, (1, 0, 2))
    return out, out[:, -1:, :], fc1


if __name__ == "__main__":
    # Small shapes consistent with the module: Body(fc_size, 256, hidden_size)
    # applied to a (batch, seq, fc_size) tensor.
    B, T = 2, 8
    fc_size = 512
    hidden_size = 32

    root = jax.random.PRNGKey(0)
    k_x, k_p = jax.random.split(root)
    conv_op = jax.random.normal(k_x, (B, T, fc_size), jnp.float32)
    raw_params = make_body_params(k_p, fc_size, hidden_size)
    kparams = prepare_kernel_params(raw_params, hidden_size)

    output, hidden, fc1_out = body_forward(conv_op, kparams, hidden_size)
    jax.block_until_ready((output, hidden, fc1_out))

    assert output.shape == (B, T, hidden_size), output.shape
    assert hidden.shape == (B, 1, hidden_size), hidden.shape
    assert fc1_out.shape == (B, T, FC_OUT), fc1_out.shape

    ref_out, ref_hid, ref_fc1 = body_reference(conv_op, raw_params)
    # NOTE: matmul operands are bf16 in the kernel; tolerances cover it.
    assert jnp.allclose(fc1_out, ref_fc1, atol=2e-2, rtol=2e-2)
    assert jnp.allclose(output, ref_out, atol=2e-2, rtol=2e-2)
    assert jnp.allclose(hidden, ref_hid, atol=2e-2, rtol=2e-2)

    print("KERNEL_OK")
</pallas_src>

<mosaic_0001>
module attributes {stable_mosaic.version = 11 : i64} {
  func.func @body_kernel(%arg0: i32, %arg1: memref<16x512xf32, #tpu.memory_space<vmem>>, %arg2: memref<512x256xbf16, #tpu.memory_space<vmem>>, %arg3: memref<1x256xf32, #tpu.memory_space<vmem>>, %arg4: memref<256x384xbf16, #tpu.memory_space<vmem>>, %arg5: memref<1x384xf32, #tpu.memory_space<vmem>>, %arg6: memref<128x384xf32, #tpu.memory_space<vmem>>, %arg7: memref<1x384xf32, #tpu.memory_space<vmem>>, %arg8: memref<2x256xf32, #tpu.memory_space<vmem>>, %arg9: memref<16x256xf32, #tpu.memory_space<vmem>>) attributes {dimension_semantics = [#tpu.dimension_semantics<arbitrary>], iteration_bounds = array<i64: 1>, scalar_prefetch = 0 : i64, scratch_operands = 0 : i64, tpu.core_type = #tpu.core_type<tc>, window_params = [{pipeline_mode = #tpu.pipeline_mode<synchronous>, transform_indices = @transform_0, window_bounds = array<i64: 16, 512>}, {pipeline_mode = #tpu.pipeline_mode<synchronous>, transform_indices = @transform_1, window_bounds = array<i64: 512, 256>}, {pipeline_mode = #tpu.pipeline_mode<synchronous>, transform_indices = @transform_2, window_bounds = array<i64: 1, 256>}, {pipeline_mode = #tpu.pipeline_mode<synchronous>, transform_indices = @transform_3, window_bounds = array<i64: 256, 384>}, {pipeline_mode = #tpu.pipeline_mode<synchronous>, transform_indices = @transform_4, window_bounds = array<i64: 1, 384>}, {pipeline_mode = #tpu.pipeline_mode<synchronous>, transform_indices = @transform_5, window_bounds = array<i64: 128, 384>}, {pipeline_mode = #tpu.pipeline_mode<synchronous>, transform_indices = @transform_6, window_bounds = array<i64: 1, 384>}, {pipeline_mode = #tpu.pipeline_mode<synchronous>, transform_indices = @transform_7, window_bounds = array<i64: 2, 256>}, {pipeline_mode = #tpu.pipeline_mode<synchronous>, transform_indices = @transform_8, window_bounds = array<i64: 16, 256>}]} {
    %c0 = arith.constant 0 : index
    %c0_0 = arith.constant 0 : index
    %0 = vector.load %arg1[%c0, %c0_0] : memref<16x512xf32, #tpu.memory_space<vmem>>, vector<16x512xf32>
    %1 = arith.truncf %0 : vector<16x512xf32> to vector<16x512xbf16>
    %c0_1 = arith.constant 0 : index
    %c0_2 = arith.constant 0 : index
    %2 = vector.load %arg2[%c0_1, %c0_2] : memref<512x256xbf16, #tpu.memory_space<vmem>>, vector<512x256xbf16>
    %cst = arith.constant dense<0.000000e+00> : vector<16x256xf32>
    %3 = tpu.matmul %1, %2, %cst {dimension_numbers = #tpu.dot_dimension_numbers<[1], [0], [0], [1], [0, 0, 1, 1], [], []>} : vector<16x512xbf16>, vector<512x256xbf16>, vector<16x256xf32> -> vector<16x256xf32>
    %c0_3 = arith.constant 0 : index
    %c0_4 = arith.constant 0 : index
    %4 = vector.load %arg3[%c0_3, %c0_4] : memref<1x256xf32, #tpu.memory_space<vmem>>, vector<1x256xf32>
    %5 = vector.broadcast %4 : vector<1x256xf32> to vector<16x256xf32>
    %6 = arith.addf %3, %5 : vector<16x256xf32>
    %cst_5 = arith.constant 0.000000e+00 : f32
    %7 = vector.broadcast %cst_5 : f32 to vector<16x256xf32>
    %8 = arith.maximumf %6, %7 : vector<16x256xf32>
    %c0_6 = arith.constant 0 : index
    %c0_7 = arith.constant 0 : index
    %9 = vector.load %arg9[%c0_6, %c0_7] : memref<16x256xf32, #tpu.memory_space<vmem>>, vector<16x256xf32>
    tpu.vector_store %arg9[%c0_6, %c0_7], %8 {strides = array<i32>} : memref<16x256xf32, #tpu.memory_space<vmem>>, vector<16x256xf32>,
    %10 = arith.truncf %8 : vector<16x256xf32> to vector<16x256xbf16>
    %c0_8 = arith.constant 0 : index
    %c0_9 = arith.constant 0 : index
    %11 = vector.load %arg4[%c0_8, %c0_9] : memref<256x384xbf16, #tpu.memory_space<vmem>>, vector<256x384xbf16>
    %cst_10 = arith.constant dense<0.000000e+00> : vector<16x384xf32>
    %12 = tpu.matmul %10, %11, %cst_10 {dimension_numbers = #tpu.dot_dimension_numbers<[1], [0], [0], [1], [0, 0, 1, 1], [], []>} : vector<16x256xbf16>, vector<256x384xbf16>, vector<16x384xf32> -> vector<16x384xf32>
    %c0_11 = arith.constant 0 : index
    %c0_12 = arith.constant 0 : index
    %13 = vector.load %arg5[%c0_11, %c0_12] : memref<1x384xf32, #tpu.memory_space<vmem>>, vector<1x384xf32>
    %14 = vector.broadcast %13 : vector<1x384xf32> to vector<16x384xf32>
    %15 = arith.addf %12, %14 : vector<16x384xf32>
    %c0_13 = arith.constant 0 : index
    %c0_14 = arith.constant 0 : index
    %16 = vector.load %arg6[%c0_13, %c0_14] : memref<128x384xf32, #tpu.memory_space<vmem>>, vector<128x384xf32>
    %c0_15 = arith.constant 0 : index
    %c0_16 = arith.constant 0 : index
    %17 = vector.load %arg7[%c0_15, %c0_16] : memref<1x384xf32, #tpu.memory_space<vmem>>, vector<1x384xf32>
    %cst_17 = arith.constant 0.000000e+00 : f32
    %18 = vector.broadcast %cst_17 : f32 to vector<2x128xf32>
    %cst_18 = arith.constant dense<0.000000e+00> : vector<2x384xf32>
    %19 = tpu.matmul %18, %16, %cst_18 {dimension_numbers = #tpu.dot_dimension_numbers<[1], [0], [0], [1], [0, 0, 1, 1], [], []>} : vector<2x128xf32>, vector<128x384xf32>, vector<2x384xf32> -> vector<2x384xf32>
    %20 = vector.broadcast %17 : vector<1x384xf32> to vector<2x384xf32>
    %21 = arith.addf %19, %20 : vector<2x384xf32>
    %22 = vector.extract_strided_slice %15 {offsets = [0, 0], sizes = [2, 384], strides = [1, 1]} : vector<16x384xf32> to vector<2x384xf32>
    %23 = vector.extract_strided_slice %22 {offsets = [0, 0], sizes = [2, 128], strides = [1, 1]} : vector<2x384xf32> to vector<2x128xf32>
    %24 = vector.extract_strided_slice %21 {offsets = [0, 0], sizes = [2, 128], strides = [1, 1]} : vector<2x384xf32> to vector<2x128xf32>
    %25 = arith.addf %23, %24 : vector<2x128xf32>
    %26 = arith.negf %25 : vector<2x128xf32>
    %27 = math.exp %26 : vector<2x128xf32>
    %cst_19 = arith.constant 1.000000e+00 : f32
    %28 = vector.broadcast %cst_19 : f32 to vector<2x128xf32>
    %29 = arith.addf %28, %27 : vector<2x128xf32>
    %30 = arith.divf %28, %29 : vector<2x128xf32>
    %31 = vector.extract_strided_slice %22 {offsets = [0, 128], sizes = [2, 128], strides = [1, 1]} : vector<2x384xf32> to vector<2x128xf32>
    %32 = vector.extract_strided_slice %21 {offsets = [0, 128], sizes = [2, 128], strides = [1, 1]} : vector<2x384xf32> to vector<2x128xf32>
    %33 = arith.addf %31, %32 : vector<2x128xf32>
    %34 = arith.negf %33 : vector<2x128xf32>
    %35 = math.exp %34 : vector<2x128xf32>
    %cst_20 = arith.constant 1.000000e+00 : f32
    %36 = vector.broadcast %cst_20 : f32 to vector<2x128xf32>
    %37 = arith.addf %36, %35 : vector<2x128xf32>
    %38 = arith.divf %36, %37 : vector<2x128xf32>
    %39 = vector.extract_strided_slice %22 {offsets = [0, 256], sizes = [2, 128], strides = [1, 1]} : vector<2x384xf32> to vector<2x128xf32>
    %40 = vector.extract_strided_slice %21 {offsets = [0, 256], sizes = [2, 128], strides = [1, 1]} : vector<2x384xf32> to vector<2x128xf32>
    %41 = arith.mulf %30, %40 : vector<2x128xf32>
    %42 = arith.addf %39, %41 : vector<2x128xf32>
    %43 = math.tanh %42 : vector<2x128xf32>
    %cst_21 = arith.constant 1.000000e+00 : f32
    %44 = vector.broadcast %cst_21 : f32 to vector<2x128xf32>
    %45 = arith.subf %44, %38 : vector<2x128xf32>
    %46 = arith.mulf %45, %43 : vector<2x128xf32>
    %47 = arith.mulf %38, %18 : vector<2x128xf32>
    %48 = arith.addf %46, %47 : vector<2x128xf32>
    %49 = vector.extract_strided_slice %48 {offsets = [0, 0], sizes = [2, 32], strides = [1, 1]} : vector<2x128xf32> to vector<2x32xf32>
    %cst_22 = arith.constant dense<0.000000e+00> : vector<2x384xf32>
    %50 = tpu.matmul %48, %16, %cst_22 {dimension_numbers = #tpu.dot_dimension_numbers<[1], [0], [0], [1], [0, 0, 1, 1], [], []>} : vector<2x128xf32>, vector<128x384xf32>, vector<2x384xf32> -> vector<2x384xf32>
    %51 = vector.broadcast %17 : vector<1x384xf32> to vector<2x384xf32>
    %52 = arith.addf %50, %51 : vector<2x384xf32>
    %53 = vector.extract_strided_slice %15 {offsets = [2, 0], sizes = [2, 384], strides = [1, 1]} : vector<16x384xf32> to vector<2x384xf32>
    %54 = vector.extract_strided_slice %53 {offsets = [0, 0], sizes = [2, 128], strides = [1, 1]} : vector<2x384xf32> to vector<2x128xf32>
    %55 = vector.extract_strided_slice %52 {offsets = [0, 0], sizes = [2, 128], strides = [1, 1]} : vector<2x384xf32> to vector<2x128xf32>
    %56 = arith.addf %54, %55 : vector<2x128xf32>
    %57 = arith.negf %56 : vector<2x128xf32>
    %58 = math.exp %57 : vector<2x128xf32>
    %cst_23 = arith.constant 1.000000e+00 : f32
    %59 = vector.broadcast %cst_23 : f32 to vector<2x128xf32>
    %60 = arith.addf %59, %58 : vector<2x128xf32>
    %61 = arith.divf %59, %60 : vector<2x128xf32>
    %62 = vector.extract_strided_slice %53 {offsets = [0, 128], sizes = [2, 128], strides = [1, 1]} : vector<2x384xf32> to vector<2x128xf32>
    %63 = vector.extract_strided_slice %52 {offsets = [0, 128], sizes = [2, 128], strides = [1, 1]} : vector<2x384xf32> to vector<2x128xf32>
    %64 = arith.addf %62, %63 : vector<2x128xf32>
    %65 = arith.negf %64 : vector<2x128xf32>
    %66 = math.exp %65 : vector<2x128xf32>
    %cst_24 = arith.constant 1.000000e+00 : f32
    %67 = vector.broadcast %cst_24 : f32 to vector<2x128xf32>
    %68 = arith.addf %67, %66 : vector<2x128xf32>
    %69 = arith.divf %67, %68 : vector<2x128xf32>
    %70 = vector.extract_strided_slice %53 {offsets = [0, 256], sizes = [2, 128], strides = [1, 1]} : vector<2x384xf32> to vector<2x128xf32>
    %71 = vector.extract_strided_slice %52 {offsets = [0, 256], sizes = [2, 128], strides = [1, 1]} : vector<2x384xf32> to vector<2x128xf32>
    %72 = arith.mulf %61, %71 : vector<2x128xf32>
    %73 = arith.addf %70, %72 : vector<2x128xf32>
    %74 = math.tanh %73 : vector<2x128xf32>
    %cst_25 = arith.constant 1.000000e+00 : f32
    %75 = vector.broadcast %cst_25 : f32 to vector<2x128xf32>
    %76 = arith.subf %75, %69 : vector<2x128xf32>
    %77 = arith.mulf %76, %74 : vector<2x128xf32>
    %78 = arith.mulf %69, %48 : vector<2x128xf32>
    %79 = arith.addf %77, %78 : vector<2x128xf32>
    %80 = vector.extract_strided_slice %79 {offsets = [0, 0], sizes = [2, 32], strides = [1, 1]} : vector<2x128xf32> to vector<2x32xf32>
    %cst_26 = arith.constant dense<0.000000e+00> : vector<2x384xf32>
    %81 = tpu.matmul %79, %16, %cst_26 {dimension_numbers = #tpu.dot_dimension_numbers<[1], [0], [0], [1], [0, 0, 1, 1], [], []>} : vector<2x128xf32>, vector<128x384xf32>, vector<2x384xf32> -> vector<2x384xf32>
    %82 = vector.broadcast %17 : vector<1x384xf32> to vector<2x384xf32>
    %83 = arith.addf %81, %82 : vector<2x384xf32>
    %84 = vector.extract_strided_slice %15 {offsets = [4, 0], sizes = [2, 384], strides = [1, 1]} : vector<16x384xf32> to vector<2x384xf32>
    %85 = vector.extract_strided_slice %84 {offsets = [0, 0], sizes = [2, 128], strides = [1, 1]} : vector<2x384xf32> to vector<2x128xf32>
    %86 = vector.extract_strided_slice %83 {offsets = [0, 0], sizes = [2, 128], strides = [1, 1]} : vector<2x384xf32> to vector<2x128xf32>
    %87 = arith.addf %85, %86 : vector<2x128xf32>
    %88 = arith.negf %87 : vector<2x128xf32>
    %89 = math.exp %88 : vector<2x128xf32>
    %cst_27 = arith.constant 1.000000e+00 : f32
    %90 = vector.broadcast %cst_27 : f32 to vector<2x128xf32>
    %91 = arith.addf %90, %89 : vector<2x128xf32>
    %92 = arith.divf %90, %91 : vector<2x128xf32>
    %93 = vector.extract_strided_slice %84 {offsets = [0, 128], sizes = [2, 128], strides = [1, 1]} : vector<2x384xf32> to vector<2x128xf32>
    %94 = vector.extract_strided_slice %83 {offsets = [0, 128], sizes = [2, 128], strides = [1, 1]} : vector<2x384xf32> to vector<2x128xf32>
    %95 = arith.addf %93, %94 : vector<2x128xf32>
    %96 = arith.negf %95 : vector<2x128xf32>
    %97 = math.exp %96 : vector<2x128xf32>
    %cst_28 = arith.constant 1.000000e+00 : f32
    %98 = vector.broadcast %cst_28 : f32 to vector<2x128xf32>
    %99 = arith.addf %98, %97 : vector<2x128xf32>
    %100 = arith.divf %98, %99 : vector<2x128xf32>
    %101 = vector.extract_strided_slice %84 {offsets = [0, 256], sizes = [2, 128], strides = [1, 1]} : vector<2x384xf32> to vector<2x128xf32>
    %102 = vector.extract_strided_slice %83 {offsets = [0, 256], sizes = [2, 128], strides = [1, 1]} : vector<2x384xf32> to vector<2x128xf32>
    %103 = arith.mulf %92, %102 : vector<2x128xf32>
    %104 = arith.addf %101, %103 : vector<2x128xf32>
    %105 = math.tanh %104 : vector<2x128xf32>
    %cst_29 = arith.constant 1.000000e+00 : f32
    %106 = vector.broadcast %cst_29 : f32 to vector<2x128xf32>
    %107 = arith.subf %106, %100 : vector<2x128xf32>
    %108 = arith.mulf %107, %105 : vector<2x128xf32>
    %109 = arith.mulf %100, %79 : vector<2x128xf32>
    %110 = arith.addf %108, %109 : vector<2x128xf32>
    %111 = vector.extract_strided_slice %110 {offsets = [0, 0], sizes = [2, 32], strides = [1, 1]} : vector<2x128xf32> to vector<2x32xf32>
    %cst_30 = arith.constant dense<0.000000e+00> : vector<2x384xf32>
    %112 = tpu.matmul %110, %16, %cst_30 {dimension_numbers = #tpu.dot_dimension_numbers<[1], [0], [0], [1], [0, 0, 1, 1], [], []>} : vector<2x128xf32>, vector<128x384xf32>, vector<2x384xf32> -> vector<2x384xf32>
    %113 = vector.broadcast %17 : vector<1x384xf32> to vector<2x384xf32>
    %114 = arith.addf %112, %113 : vector<2x384xf32>
    %115 = vector.extract_strided_slice %15 {offsets = [6, 0], sizes = [2, 384], strides = [1, 1]} : vector<16x384xf32> to vector<2x384xf32>
    %116 = vector.extract_strided_slice %115 {offsets = [0, 0], sizes = [2, 128], strides = [1, 1]} : vector<2x384xf32> to vector<2x128xf32>
    %117 = vector.extract_strided_slice %114 {offsets = [0, 0], sizes = [2, 128], strides = [1, 1]} : vector<2x384xf32> to vector<2x128xf32>
    %118 = arith.addf %116, %117 : vector<2x128xf32>
    %119 = arith.negf %118 : vector<2x128xf32>
    %120 = math.exp %119 : vector<2x128xf32>
    %cst_31 = arith.constant 1.000000e+00 : f32
    %121 = vector.broadcast %cst_31 : f32 to vector<2x128xf32>
    %122 = arith.addf %121, %120 : vector<2x128xf32>
    %123 = arith.divf %121, %122 : vector<2x128xf32>
    %124 = vector.extract_strided_slice %115 {offsets = [0, 128], sizes = [2, 128], strides = [1, 1]} : vector<2x384xf32> to vector<2x128xf32>
    %125 = vector.extract_strided_slice %114 {offsets = [0, 128], sizes = [2, 128], strides = [1, 1]} : vector<2x384xf32> to vector<2x128xf32>
    %126 = arith.addf %124, %125 : vector<2x128xf32>
    %127 = arith.negf %126 : vector<2x128xf32>
    %128 = math.exp %127 : vector<2x128xf32>
    %cst_32 = arith.constant 1.000000e+00 : f32
    %129 = vector.broadcast %cst_32 : f32 to vector<2x128xf32>
    %130 = arith.addf %129, %128 : vector<2x128xf32>
    %131 = arith.divf %129, %130 : vector<2x128xf32>
    %132 = vector.extract_strided_slice %115 {offsets = [0, 256], sizes = [2, 128], strides = [1, 1]} : vector<2x384xf32> to vector<2x128xf32>
    %133 = vector.extract_strided_slice %114 {offsets = [0, 256], sizes = [2, 128], strides = [1, 1]} : vector<2x384xf32> to vector<2x128xf32>
    %134 = arith.mulf %123, %133 : vector<2x128xf32>
    %135 = arith.addf %132, %134 : vector<2x128xf32>
    %136 = math.tanh %135 : vector<2x128xf32>
    %cst_33 = arith.constant 1.000000e+00 : f32
    %137 = vector.broadcast %cst_33 : f32 to vector<2x128xf32>
    %138 = arith.subf %137, %131 : vector<2x128xf32>
    %139 = arith.mulf %138, %136 : vector<2x128xf32>
    %140 = arith.mulf %131, %110 : vector<2x128xf32>
    %141 = arith.addf %139, %140 : vector<2x128xf32>
    %142 = vector.extract_strided_slice %141 {offsets = [0, 0], sizes = [2, 32], strides = [1, 1]} : vector<2x128xf32> to vector<2x32xf32>
    %cst_34 = arith.constant dense<0.000000e+00> : vector<2x384xf32>
    %143 = tpu.matmul %141, %16, %cst_34 {dimension_numbers = #tpu.dot_dimension_numbers<[1], [0], [0], [1], [0, 0, 1, 1], [], []>} : vector<2x128xf32>, vector<128x384xf32>, vector<2x384xf32> -> vector<2x384xf32>
    %144 = vector.broadcast %17 : vector<1x384xf32> to vector<2x384xf32>
    %145 = arith.addf %143, %144 : vector<2x384xf32>
    %146 = vector.extract_strided_slice %15 {offsets = [8, 0], sizes = [2, 384], strides = [1, 1]} : vector<16x384xf32> to vector<2x384xf32>
    %147 = vector.extract_strided_slice %146 {offsets = [0, 0], sizes = [2, 128], strides = [1, 1]} : vector<2x384xf32> to vector<2x128xf32>
    %148 = vector.extract_strided_slice %145 {offsets = [0, 0], sizes = [2, 128], strides = [1, 1]} : vector<2x384xf32> to vector<2x128xf32>
    %149 = arith.addf %147, %148 : vector<2x128xf32>
    %150 = arith.negf %149 : vector<2x128xf32>
    %151 = math.exp %150 : vector<2x128xf32>
    %cst_35 = arith.constant 1.000000e+00 : f32
    %152 = vector.broadcast %cst_35 : f32 to vector<2x128xf32>
    %153 = arith.addf %152, %151 : vector<2x128xf32>
    %154 = arith.divf %152, %153 : vector<2x128xf32>
    %155 = vector.extract_strided_slice %146 {offsets = [0, 128], sizes = [2, 128], strides = [1, 1]} : vector<2x384xf32> to vector<2x128xf32>
    %156 = vector.extract_strided_slice %145 {offsets = [0, 128], sizes = [2, 128], strides = [1, 1]} : vector<2x384xf32> to vector<2x128xf32>
    %157 = arith.addf %155, %156 : vector<2x128xf32>
    %158 = arith.negf %157 : vector<2x128xf32>
    %159 = math.exp %158 : vector<2x128xf32>
    %cst_36 = arith.constant 1.000000e+00 : f32
    %160 = vector.broadcast %cst_36 : f32 to vector<2x128xf32>
    %161 = arith.addf %160, %159 : vector<2x128xf32>
    %162 = arith.divf %160, %161 : vector<2x128xf32>
    %163 = vector.extract_strided_slice %146 {offsets = [0, 256], sizes = [2, 128], strides = [1, 1]} : vector<2x384xf32> to vector<2x128xf32>
    %164 = vector.extract_strided_slice %145 {offsets = [0, 256], sizes = [2, 128], strides = [1, 1]} : vector<2x384xf32> to vector<2x128xf32>
    %165 = arith.mulf %154, %164 : vector<2x128xf32>
    %166 = arith.addf %163, %165 : vector<2x128xf32>
    %167 = math.tanh %166 : vector<2x128xf32>
    %cst_37 = arith.constant 1.000000e+00 : f32
    %168 = vector.broadcast %cst_37 : f32 to vector<2x128xf32>
    %169 = arith.subf %168, %162 : vector<2x128xf32>
    %170 = arith.mulf %169, %167 : vector<2x128xf32>
    %171 = arith.mulf %162, %141 : vector<2x128xf32>
    %172 = arith.addf %170, %171 : vector<2x128xf32>
    %173 = vector.extract_strided_slice %172 {offsets = [0, 0], sizes = [2, 32], strides = [1, 1]} : vector<2x128xf32> to vector<2x32xf32>
    %cst_38 = arith.constant dense<0.000000e+00> : vector<2x384xf32>
    %174 = tpu.matmul %172, %16, %cst_38 {dimension_numbers = #tpu.dot_dimension_numbers<[1], [0], [0], [1], [0, 0, 1, 1], [], []>} : vector<2x128xf32>, vector<128x384xf32>, vector<2x384xf32> -> vector<2x384xf32>
    %175 = vector.broadcast %17 : vector<1x384xf32> to vector<2x384xf32>
    %176 = arith.addf %174, %175 : vector<2x384xf32>
    %177 = vector.extract_strided_slice %15 {offsets = [10, 0], sizes = [2, 384], strides = [1, 1]} : vector<16x384xf32> to vector<2x384xf32>
    %178 = vector.extract_strided_slice %177 {offsets = [0, 0], sizes = [2, 128], strides = [1, 1]} : vector<2x384xf32> to vector<2x128xf32>
    %179 = vector.extract_strided_slice %176 {offsets = [0, 0], sizes = [2, 128], strides = [1, 1]} : vector<2x384xf32> to vector<2x128xf32>
    %180 = arith.addf %178, %179 : vector<2x128xf32>
    %181 = arith.negf %180 : vector<2x128xf32>
    %182 = math.exp %181 : vector<2x128xf32>
    %cst_39 = arith.constant 1.000000e+00 : f32
    %183 = vector.broadcast %cst_39 : f32 to vector<2x128xf32>
    %184 = arith.addf %183, %182 : vector<2x128xf32>
    %185 = arith.divf %183, %184 : vector<2x128xf32>
    %186 = vector.extract_strided_slice %177 {offsets = [0, 128], sizes = [2, 128], strides = [1, 1]} : vector<2x384xf32> to vector<2x128xf32>
    %187 = vector.extract_strided_slice %176 {offsets = [0, 128], sizes = [2, 128], strides = [1, 1]} : vector<2x384xf32> to vector<2x128xf32>
    %188 = arith.addf %186, %187 : vector<2x128xf32>
    %189 = arith.negf %188 : vector<2x128xf32>
    %190 = math.exp %189 : vector<2x128xf32>
    %cst_40 = arith.constant 1.000000e+00 : f32
    %191 = vector.broadcast %cst_40 : f32 to vector<2x128xf32>
    %192 = arith.addf %191, %190 : vector<2x128xf32>
    %193 = arith.divf %191, %192 : vector<2x128xf32>
    %194 = vector.extract_strided_slice %177 {offsets = [0, 256], sizes = [2, 128], strides = [1, 1]} : vector<2x384xf32> to vector<2x128xf32>
    %195 = vector.extract_strided_slice %176 {offsets = [0, 256], sizes = [2, 128], strides = [1, 1]} : vector<2x384xf32> to vector<2x128xf32>
    %196 = arith.mulf %185, %195 : vector<2x128xf32>
    %197 = arith.addf %194, %196 : vector<2x128xf32>
    %198 = math.tanh %197 : vector<2x128xf32>
    %cst_41 = arith.constant 1.000000e+00 : f32
    %199 = vector.broadcast %cst_41 : f32 to vector<2x128xf32>
    %200 = arith.subf %199, %193 : vector<2x128xf32>
    %201 = arith.mulf %200, %198 : vector<2x128xf32>
    %202 = arith.mulf %193, %172 : vector<2x128xf32>
    %203 = arith.addf %201, %202 : vector<2x128xf32>
    %204 = vector.extract_strided_slice %203 {offsets = [0, 0], sizes = [2, 32], strides = [1, 1]} : vector<2x128xf32> to vector<2x32xf32>
    %cst_42 = arith.constant dense<0.000000e+00> : vector<2x384xf32>
    %205 = tpu.matmul %203, %16, %cst_42 {dimension_numbers = #tpu.dot_dimension_numbers<[1], [0], [0], [1], [0, 0, 1, 1], [], []>} : vector<2x128xf32>, vector<128x384xf32>, vector<2x384xf32> -> vector<2x384xf32>
    %206 = vector.broadcast %17 : vector<1x384xf32> to vector<2x384xf32>
    %207 = arith.addf %205, %206 : vector<2x384xf32>
    %208 = vector.extract_strided_slice %15 {offsets = [12, 0], sizes = [2, 384], strides = [1, 1]} : vector<16x384xf32> to vector<2x384xf32>
    %209 = vector.extract_strided_slice %208 {offsets = [0, 0], sizes = [2, 128], strides = [1, 1]} : vector<2x384xf32> to vector<2x128xf32>
    %210 = vector.extract_strided_slice %207 {offsets = [0, 0], sizes = [2, 128], strides = [1, 1]} : vector<2x384xf32> to vector<2x128xf32>
    %211 = arith.addf %209, %210 : vector<2x128xf32>
    %212 = arith.negf %211 : vector<2x128xf32>
    %213 = math.exp %212 : vector<2x128xf32>
    %cst_43 = arith.constant 1.000000e+00 : f32
    %214 = vector.broadcast %cst_43 : f32 to vector<2x128xf32>
    %215 = arith.addf %214, %213 : vector<2x128xf32>
    %216 = arith.divf %214, %215 : vector<2x128xf32>
    %217 = vector.extract_strided_slice %208 {offsets = [0, 128], sizes = [2, 128], strides = [1, 1]} : vector<2x384xf32> to vector<2x128xf32>
    %218 = vector.extract_strided_slice %207 {offsets = [0, 128], sizes = [2, 128], strides = [1, 1]} : vector<2x384xf32> to vector<2x128xf32>
    %219 = arith.addf %217, %218 : vector<2x128xf32>
    %220 = arith.negf %219 : vector<2x128xf32>
    %221 = math.exp %220 : vector<2x128xf32>
    %cst_44 = arith.constant 1.000000e+00 : f32
    %222 = vector.broadcast %cst_44 : f32 to vector<2x128xf32>
    %223 = arith.addf %222, %221 : vector<2x128xf32>
    %224 = arith.divf %222, %223 : vector<2x128xf32>
    %225 = vector.extract_strided_slice %208 {offsets = [0, 256], sizes = [2, 128], strides = [1, 1]} : vector<2x384xf32> to vector<2x128xf32>
    %226 = vector.extract_strided_slice %207 {offsets = [0, 256], sizes = [2, 128], strides = [1, 1]} : vector<2x384xf32> to vector<2x128xf32>
    %227 = arith.mulf %216, %226 : vector<2x128xf32>
    %228 = arith.addf %225, %227 : vector<2x128xf32>
    %229 = math.tanh %228 : vector<2x128xf32>
    %cst_45 = arith.constant 1.000000e+00 : f32
    %230 = vector.broadcast %cst_45 : f32 to vector<2x128xf32>
    %231 = arith.subf %230, %224 : vector<2x128xf32>
    %232 = arith.mulf %231, %229 : vector<2x128xf32>
    %233 = arith.mulf %224, %203 : vector<2x128xf32>
    %234 = arith.addf %232, %233 : vector<2x128xf32>
    %235 = vector.extract_strided_slice %234 {offsets = [0, 0], sizes = [2, 32], strides = [1, 1]} : vector<2x128xf32> to vector<2x32xf32>
    %cst_46 = arith.constant dense<0.000000e+00> : vector<2x384xf32>
    %236 = tpu.matmul %234, %16, %cst_46 {dimension_numbers = #tpu.dot_dimension_numbers<[1], [0], [0], [1], [0, 0, 1, 1], [], []>} : vector<2x128xf32>, vector<128x384xf32>, vector<2x384xf32> -> vector<2x384xf32>
    %237 = vector.broadcast %17 : vector<1x384xf32> to vector<2x384xf32>
    %238 = arith.addf %236, %237 : vector<2x384xf32>
    %239 = vector.extract_strided_slice %15 {offsets = [14, 0], sizes = [2, 384], strides = [1, 1]} : vector<16x384xf32> to vector<2x384xf32>
    %240 = vector.extract_strided_slice %239 {offsets = [0, 0], sizes = [2, 128], strides = [1, 1]} : vector<2x384xf32> to vector<2x128xf32>
    %241 = vector.extract_strided_slice %238 {offsets = [0, 0], sizes = [2, 128], strides = [1, 1]} : vector<2x384xf32> to vector<2x128xf32>
    %242 = arith.addf %240, %241 : vector<2x128xf32>
    %243 = arith.negf %242 : vector<2x128xf32>
    %244 = math.exp %243 : vector<2x128xf32>
    %cst_47 = arith.constant 1.000000e+00 : f32
    %245 = vector.broadcast %cst_47 : f32 to vector<2x128xf32>
    %246 = arith.addf %245, %244 : vector<2x128xf32>
    %247 = arith.divf %245, %246 : vector<2x128xf32>
    %248 = vector.extract_strided_slice %239 {offsets = [0, 128], sizes = [2, 128], strides = [1, 1]} : vector<2x384xf32> to vector<2x128xf32>
    %249 = vector.extract_strided_slice %238 {offsets = [0, 128], sizes = [2, 128], strides = [1, 1]} : vector<2x384xf32> to vector<2x128xf32>
    %250 = arith.addf %248, %249 : vector<2x128xf32>
    %251 = arith.negf %250 : vector<2x128xf32>
    %252 = math.exp %251 : vector<2x128xf32>
    %cst_48 = arith.constant 1.000000e+00 : f32
    %253 = vector.broadcast %cst_48 : f32 to vector<2x128xf32>
    %254 = arith.addf %253, %252 : vector<2x128xf32>
    %255 = arith.divf %253, %254 : vector<2x128xf32>
    %256 = vector.extract_strided_slice %239 {offsets = [0, 256], sizes = [2, 128], strides = [1, 1]} : vector<2x384xf32> to vector<2x128xf32>
    %257 = vector.extract_strided_slice %238 {offsets = [0, 256], sizes = [2, 128], strides = [1, 1]} : vector<2x384xf32> to vector<2x128xf32>
    %258 = arith.mulf %247, %257 : vector<2x128xf32>
    %259 = arith.addf %256, %258 : vector<2x128xf32>
    %260 = math.tanh %259 : vector<2x128xf32>
    %cst_49 = arith.constant 1.000000e+00 : f32
    %261 = vector.broadcast %cst_49 : f32 to vector<2x128xf32>
    %262 = arith.subf %261, %255 : vector<2x128xf32>
    %263 = arith.mulf %262, %260 : vector<2x128xf32>
    %264 = arith.mulf %255, %234 : vector<2x128xf32>
    %265 = arith.addf %263, %264 : vector<2x128xf32>
    %266 = vector.extract_strided_slice %265 {offsets = [0, 0], sizes = [2, 32], strides = [1, 1]} : vector<2x128xf32> to vector<2x32xf32>
    %267 = tpu.concatenate %49, %80, %111, %142, %173, %204, %235, %266 in 1 : vector<2x32xf32>, vector<2x32xf32>, vector<2x32xf32>, vector<2x32xf32>, vector<2x32xf32>, vector<2x32xf32>, vector<2x32xf32>, vector<2x32xf32> -> vector<2x256xf32>
    %c0_50 = arith.constant 0 : index
    %c0_51 = arith.constant 0 : index
    %268 = vector.load %arg8[%c0_50, %c0_51] : memref<2x256xf32, #tpu.memory_space<vmem>>, vector<2x256xf32>
    tpu.vector_store %arg8[%c0_50, %c0_51], %267 {strides = array<i32>} : memref<2x256xf32, #tpu.memory_space<vmem>>, vector<2x256xf32>,
    return
  }
  func.func @transform_0(%arg0: i32) -> (i32, i32) {
    %c0_i32 = arith.constant 0 : i32
    %c0_i32_0 = arith.constant 0 : i32
    %c0_i32_1 = arith.constant 0 : i32
    return %c0_i32, %c0_i32_0 : i32, i32
  }
  func.func @transform_1(%arg0: i32) -> (i32, i32) {
    %c0_i32 = arith.constant 0 : i32
    %c0_i32_0 = arith.constant 0 : i32
    %c0_i32_1 = arith.constant 0 : i32
    return %c0_i32, %c0_i32_0 : i32, i32
  }
  func.func @transform_2(%arg0: i32) -> (i32, i32) {
    %c0_i32 = arith.constant 0 : i32
    %c0_i32_0 = arith.constant 0 : i32
    %c0_i32_1 = arith.constant 0 : i32
    return %c0_i32, %c0_i32_0 : i32, i32
  }
  func.func @transform_3(%arg0: i32) -> (i32, i32) {
    %c0_i32 = arith.constant 0 : i32
    %c0_i32_0 = arith.constant 0 : i32
    %c0_i32_1 = arith.constant 0 : i32
    return %c0_i32, %c0_i32_0 : i32, i32
  }
  func.func @transform_4(%arg0: i32) -> (i32, i32) {
    %c0_i32 = arith.constant 0 : i32
    %c0_i32_0 = arith.constant 0 : i32
    %c0_i32_1 = arith.constant 0 : i32
    return %c0_i32, %c0_i32_0 : i32, i32
  }
  func.func @transform_5(%arg0: i32) -> (i32, i32) {
    %c0_i32 = arith.constant 0 : i32
    %c0_i32_0 = arith.constant 0 : i32
    %c0_i32_1 = arith.constant 0 : i32
    return %c0_i32, %c0_i32_0 : i32, i32
  }
  func.func @transform_6(%arg0: i32) -> (i32, i32) {
    %c0_i32 = arith.constant 0 : i32
    %c0_i32_0 = arith.constant 0 : i32
    %c0_i32_1 = arith.constant 0 : i32
    return %c0_i32, %c0_i32_0 : i32, i32
  }
  func.func @transform_7(%arg0: i32) -> (i32, i32) {
    %c0_i32 = arith.constant 0 : i32
    %c0_i32_0 = arith.constant 0 : i32
    %c0_i32_1 = arith.constant 0 : i32
    return %c0_i32, %c0_i32_0 : i32, i32
  }
  func.func @transform_8(%arg0: i32) -> (i32, i32) {
    %c0_i32 = arith.constant 0 : i32
    %c0_i32_0 = arith.constant 0 : i32
    %c0_i32_1 = arith.constant 0 : i32
    return %c0_i32, %c0_i32_0 : i32, i32
  }
}

</mosaic_0001>

<llo_original>
// kernel: tpu_custom_call.1
$region0: #{tpu_custom_call.1}
  #allocation0 [shape = 'u32[]', space=smem, size = 0x4, offset = 0x4, fixed_abs, tag = 'smem constant byte address 0x4 - core index']
  #allocation1 [shape = 'u32[144,128]{1,0:T(1,128)}', space=vmem, size = 0x12000, scoped, tag = 'internal scratch']
  %s0 = inlined_call_operand.hbm [shape: f32[16,512], index: 0, kind: input, shape index: {}]
  %s1 = inlined_call_operand.hbm [shape: bf16[512,256], index: 1, kind: input, shape index: {}]
  %s2 = inlined_call_operand.hbm [shape: f32[1,256], index: 2, kind: input, shape index: {}]
  %s3 = inlined_call_operand.hbm [shape: bf16[256,384], index: 3, kind: input, shape index: {}]
  %s4 = inlined_call_operand.vmem [shape: f32[1,384], index: 4, kind: input, shape index: {}]
  %s5 = inlined_call_operand.hbm [shape: f32[128,384], index: 5, kind: input, shape index: {}]
  %s6 = inlined_call_operand.vmem [shape: f32[1,384], index: 6, kind: input, shape index: {}]
  %s7 = inlined_call_operand.hbm [shape: f32[2,256], index: 7, kind: output, shape index: {0}]
  %s8 = inlined_call_operand.hbm [shape: f32[16,256], index: 8, kind: output, shape index: {1}]
  %9 = xla_tuple %s7, %s8
  %s10 = sld [smem:[#allocation0]]
  $region66: #{tpu_custom_call.1} parent=0
    _
  %s12 = ssub.s32 1, %s10
  %s13 = scalar_select 0, %s12, %s10
  $region1: #{tpu_custom_call.1} parent=0
    #allocation2 [shape = 'u8[32768]{0}', space=vmem, size = 0x8000, scoped, tag = 'input window, operand 0, single buffered']
    #allocation3 [shape = 's32[1]{0}', space=sflag, size = 0x4, scoped, tag = 'scoped memory for tpu_custom_call.1']
    #allocation4 [shape = 's32[1]{0}', space=sflag, size = 0x4, scoped, tag = 'scoped memory for tpu_custom_call.1']
    #allocation5 [shape = 'u8[262144]{0}', space=vmem, size = 0x40000, scoped, tag = 'input window, operand 1, single buffered']
    #allocation6 [shape = 's32[1]{0}', space=sflag, size = 0x4, scoped, tag = 'scoped memory for tpu_custom_call.1']
    #allocation7 [shape = 'u8[1024]{0}', space=vmem, size = 0x400, scoped, tag = 'input window, operand 2, single buffered']
    #allocation8 [shape = 'u8[196608]{0}', space=vmem, size = 0x30000, scoped, tag = 'input window, operand 3, single buffered']
    #allocation9 [shape = 's32[1]{0}', space=sflag, size = 0x4, scoped, tag = 'scoped memory for tpu_custom_call.1']
    #allocation10 [shape = 'u8[196608]{0}', space=vmem, size = 0x30000, scoped, tag = 'input window, operand 5, single buffered']
    #allocation11 [shape = 'u8[2048]{0}', space=vmem, size = 0x800, scoped, tag = 'output window, operand 0, single buffered']
    #allocation12 [shape = 'u8[16384]{0}', space=vmem, size = 0x4000, scoped, tag = 'output window, operand 1, single buffered']
    #allocation13 [shape = 's32[1]{0}', space=sflag, size = 0x4, scoped, tag = 'scoped memory for tpu_custom_call.1']
    %14 = vsyncpa [#allocation3], 0
    %15 = vsyncpa [#allocation6], 0
    %16 = vsyncpa [#allocation9], 0
    %17 = vsyncpa [#allocation4], 0
    %18 = vsyncpa [#allocation13], 0
    // Predicated region
    $region2: #{tpu_custom_call.1} parent=1 // pred_check
      _
    $region3: #{tpu_custom_call.1} parent=1 // pred_check_branch
      %20 = sbr.rel (0) target = $region5
    $region4: #{tpu_custom_call.1} parent=1 // pred_region
      %s22 = ssub.s32 1024, 1024
      %23 = vsyncadd [#allocation3], %s22
      %s24 = sshll.u32 [#allocation2], 4
      %s25 = int_to_ptr.vmem [resolvable:$true] %s24
      %30 = dma.hbm_to_vmem [thread:$0]  %s0, 1024, %s25, [#allocation3], 512, 512, 32
    $region5: #{tpu_custom_call.1} parent=1 // pred_fallthru
      _
    // Predicated region
    $region6: #{tpu_custom_call.1} parent=1 // pred_check
      _
    $region7: #{tpu_custom_call.1} parent=1 // pred_check_branch
      %32 = sbr.rel (0) target = $region9
    $region8: #{tpu_custom_call.1} parent=1 // pred_region
      %s34 = ssub.s32 8192, 8192
      %35 = vsyncadd [#allocation6], %s34
      %s36 = sshll.u32 [#allocation5], 4
      %s37 = int_to_ptr.vmem [resolvable:$true] %s36
      %42 = dma.hbm_to_vmem [thread:$0]  %s1, 8192, %s37, [#allocation6], 128, 128, 8
    $region9: #{tpu_custom_call.1} parent=1 // pred_fallthru
      _
    // Predicated region
    $region10: #{tpu_custom_call.1} parent=1 // pred_check
      _
    $region11: #{tpu_custom_call.1} parent=1 // pred_check_branch
      %44 = sbr.rel (0) target = $region13
    $region12: #{tpu_custom_call.1} parent=1 // pred_region
      %s46 = ssub.s32 32, 32
      %47 = vsyncadd [#allocation6], %s46
      %s49 = sshll.u32 [#allocation7], 4
      %s50 = int_to_ptr.vmem [resolvable:$true] %s49
      %52 = dma.hbm_to_vmem [thread:$0]  %s2, 32, %s50, [#allocation6]
    $region13: #{tpu_custom_call.1} parent=1 // pred_fallthru
      _
    // Predicated region
    $region14: #{tpu_custom_call.1} parent=1 // pred_check
      _
    $region15: #{tpu_custom_call.1} parent=1 // pred_check_branch
      %54 = sbr.rel (0) target = $region17
    $region16: #{tpu_custom_call.1} parent=1 // pred_region
      %s56 = ssub.s32 6144, 6144
      %57 = vsyncadd [#allocation9], %s56
      %s58 = sshll.u32 [#allocation8], 4
      %s59 = int_to_ptr.vmem [resolvable:$true] %s58
      %64 = dma.hbm_to_vmem [thread:$0]  %s3, 6144, %s59, [#allocation9], 192, 192, 12
    $region17: #{tpu_custom_call.1} parent=1 // pred_fallthru
      _
    // Predicated region
    $region18: #{tpu_custom_call.1} parent=1 // pred_check
      _
    $region19: #{tpu_custom_call.1} parent=1 // pred_check_branch
      %66 = sbr.rel (0) target = $region21
    $region20: #{tpu_custom_call.1} parent=1 // pred_region
      _
    $region21: #{tpu_custom_call.1} parent=1 // pred_fallthru
      _
    // Predicated region
    $region22: #{tpu_custom_call.1} parent=1 // pred_check
      _
    $region23: #{tpu_custom_call.1} parent=1 // pred_check_branch
      %68 = sbr.rel (0) target = $region25
    $region24: #{tpu_custom_call.1} parent=1 // pred_region
      %s70 = ssub.s32 6144, 6144
      %71 = vsyncadd [#allocation9], %s70
      %s72 = sshll.u32 [#allocation10], 4
      %s73 = int_to_ptr.vmem [resolvable:$true] %s72
      %78 = dma.hbm_to_vmem [thread:$0]  %s5, 6144, %s73, [#allocation9], 384, 384, 24
    $region25: #{tpu_custom_call.1} parent=1 // pred_fallthru
      _
    // Predicated region
    $region26: #{tpu_custom_call.1} parent=1 // pred_check
      _
    $region27: #{tpu_custom_call.1} parent=1 // pred_check_branch
      %80 = sbr.rel (0) target = $region29
    $region28: #{tpu_custom_call.1} parent=1 // pred_region
      _
    $region29: #{tpu_custom_call.1} parent=1 // pred_fallthru
      _
    // Predicated region
    $region30: #{tpu_custom_call.1} parent=1 // pred_check
      _
    $region31: #{tpu_custom_call.1} parent=1 // pred_check_branch
      %82 = sbr.rel (0) target = $region33
    $region32: #{tpu_custom_call.1} parent=1 // pred_region
      %83 = dma.done [#allocation3], 1024
    $region33: #{tpu_custom_call.1} parent=1 // pred_fallthru
      _
    // Predicated region
    $region34: #{tpu_custom_call.1} parent=1 // pred_check
      _
    $region35: #{tpu_custom_call.1} parent=1 // pred_check_branch
      %85 = sbr.rel (0) target = $region37
    $region36: #{tpu_custom_call.1} parent=1 // pred_region
      %86 = dma.done [#allocation6], 8192
    $region37: #{tpu_custom_call.1} parent=1 // pred_fallthru
      _
    // Predicated region
    $region38: #{tpu_custom_call.1} parent=1 // pred_check
      _
    $region39: #{tpu_custom_call.1} parent=1 // pred_check_branch
      %88 = sbr.rel (0) target = $region41
    $region40: #{tpu_custom_call.1} parent=1 // pred_region
      %89 = dma.done [#allocation6], 32
    $region41: #{tpu_custom_call.1} parent=1 // pred_fallthru
      _
    // Predicated region
    $region42: #{tpu_custom_call.1} parent=1 // pred_check
      _
    $region43: #{tpu_custom_call.1} parent=1 // pred_check_branch
      %91 = sbr.rel (0) target = $region45
    $region44: #{tpu_custom_call.1} parent=1 // pred_region
      %92 = dma.done [#allocation9], 6144
    $region45: #{tpu_custom_call.1} parent=1 // pred_fallthru
      _
    // Predicated region
    $region46: #{tpu_custom_call.1} parent=1 // pred_check
      _
    $region47: #{tpu_custom_call.1} parent=1 // pred_check_branch
      %94 = sbr.rel (0) target = $region49
    $region48: #{tpu_custom_call.1} parent=1 // pred_region
      %95 = dma.done [#allocation9], 6144
    $region49: #{tpu_custom_call.1} parent=1 // pred_fallthru
      _
    %v97 = vld [vmem:[#allocation2] sm:$0xff]
    %v98 = vld [vmem:[#allocation2 + $0x8] sm:$0xff]
    %v99 = vld [vmem:[#allocation2 + $0x10] sm:$0xff]
    %v100 = vld [vmem:[#allocation2 + $0x18] sm:$0xff]
    %v101 = vld [vmem:[#allocation2 + $0x20] sm:$0xff]
    %v102 = vld [vmem:[#allocation2 + $0x28] sm:$0xff]
    %v103 = vld [vmem:[#allocation2 + $0x30] sm:$0xff]
    %v104 = vld [vmem:[#allocation2 + $0x38] sm:$0xff]
    %v105 = vpack.c.bf16 %v101, %v97
    %v106 = vpack.c.bf16 %v102, %v98
    %v107 = vpack.c.bf16 %v103, %v99
    %v108 = vpack.c.bf16 %v104, %v100
    %v109 = vld [vmem:[#allocation5] sm:$0xff]
    %v110 = vld [vmem:[#allocation5 + $0x8] sm:$0xff]
    %v111 = vld [vmem:[#allocation5 + $0x10] sm:$0xff]
    %v112 = vld [vmem:[#allocation5 + $0x18] sm:$0xff]
    %v113 = vld [vmem:[#allocation5 + $0x20] sm:$0xff]
    %v114 = vld [vmem:[#allocation5 + $0x28] sm:$0xff]
    %v115 = vld [vmem:[#allocation5 + $0x30] sm:$0xff]
    %v116 = vld [vmem:[#allocation5 + $0x38] sm:$0xff]
    %v117 = vld [vmem:[#allocation5 + $0x40] sm:$0xff]
    %v118 = vld [vmem:[#allocation5 + $0x48] sm:$0xff]
    %v119 = vld [vmem:[#allocation5 + $0x50] sm:$0xff]
    %v120 = vld [vmem:[#allocation5 + $0x58] sm:$0xff]
    %v121 = vld [vmem:[#allocation5 + $0x60] sm:$0xff]
    %v122 = vld [vmem:[#allocation5 + $0x68] sm:$0xff]
    %v123 = vld [vmem:[#allocation5 + $0x70] sm:$0xff]
    %v124 = vld [vmem:[#allocation5 + $0x78] sm:$0xff]
    %v125 = vld [vmem:[#allocation5 + $0x80] sm:$0xff]
    %v126 = vld [vmem:[#allocation5 + $0x88] sm:$0xff]
    %v127 = vld [vmem:[#allocation5 + $0x90] sm:$0xff]
    %v128 = vld [vmem:[#allocation5 + $0x98] sm:$0xff]
    %v129 = vld [vmem:[#allocation5 + $0xa0] sm:$0xff]
    %v130 = vld [vmem:[#allocation5 + $0xa8] sm:$0xff]
    %v131 = vld [vmem:[#allocation5 + $0xb0] sm:$0xff]
    %v132 = vld [vmem:[#allocation5 + $0xb8] sm:$0xff]
    %v133 = vld [vmem:[#allocation5 + $0xc0] sm:$0xff]
    %v134 = vld [vmem:[#allocation5 + $0xc8] sm:$0xff]
    %v135 = vld [vmem:[#allocation5 + $0xd0] sm:$0xff]
    %v136 = vld [vmem:[#allocation5 + $0xd8] sm:$0xff]
    %v137 = vld [vmem:[#allocation5 + $0xe0] sm:$0xff]
    %v138 = vld [vmem:[#allocation5 + $0xe8] sm:$0xff]
    %v139 = vld [vmem:[#allocation5 + $0xf0] sm:$0xff]
    %v140 = vld [vmem:[#allocation5 + $0xf8] sm:$0xff]
    %v141 = vld [vmem:[#allocation5 + $0x100] sm:$0xff]
    %v142 = vld [vmem:[#allocation5 + $0x108] sm:$0xff]
    %v143 = vld [vmem:[#allocation5 + $0x110] sm:$0xff]
    %v144 = vld [vmem:[#allocation5 + $0x118] sm:$0xff]
    %v145 = vld [vmem:[#allocation5 + $0x120] sm:$0xff]
    %v146 = vld [vmem:[#allocation5 + $0x128] sm:$0xff]
    %v147 = vld [vmem:[#allocation5 + $0x130] sm:$0xff]
    %v148 = vld [vmem:[#allocation5 + $0x138] sm:$0xff]
    %v149 = vld [vmem:[#allocation5 + $0x140] sm:$0xff]
    %v150 = vld [vmem:[#allocation5 + $0x148] sm:$0xff]
    %v151 = vld [vmem:[#allocation5 + $0x150] sm:$0xff]
    %v152 = vld [vmem:[#allocation5 + $0x158] sm:$0xff]
    %v153 = vld [vmem:[#allocation5 + $0x160] sm:$0xff]
    %v154 = vld [vmem:[#allocation5 + $0x168] sm:$0xff]
    %v155 = vld [vmem:[#allocation5 + $0x170] sm:$0xff]
    %v156 = vld [vmem:[#allocation5 + $0x178] sm:$0xff]
    %v157 = vld [vmem:[#allocation5 + $0x180] sm:$0xff]
    %v158 = vld [vmem:[#allocation5 + $0x188] sm:$0xff]
    %v159 = vld [vmem:[#allocation5 + $0x190] sm:$0xff]
    %v160 = vld [vmem:[#allocation5 + $0x198] sm:$0xff]
    %v161 = vld [vmem:[#allocation5 + $0x1a0] sm:$0xff]
    %v162 = vld [vmem:[#allocation5 + $0x1a8] sm:$0xff]
    %v163 = vld [vmem:[#allocation5 + $0x1b0] sm:$0xff]
    %v164 = vld [vmem:[#allocation5 + $0x1b8] sm:$0xff]
    %v165 = vld [vmem:[#allocation5 + $0x1c0] sm:$0xff]
    %v166 = vld [vmem:[#allocation5 + $0x1c8] sm:$0xff]
    %v167 = vld [vmem:[#allocation5 + $0x1d0] sm:$0xff]
    %v168 = vld [vmem:[#allocation5 + $0x1d8] sm:$0xff]
    %v169 = vld [vmem:[#allocation5 + $0x1e0] sm:$0xff]
    %v170 = vld [vmem:[#allocation5 + $0x1e8] sm:$0xff]
    %v171 = vld [vmem:[#allocation5 + $0x1f0] sm:$0xff]
    %v172 = vld [vmem:[#allocation5 + $0x1f8] sm:$0xff]
    %v173 = vld [vmem:[#allocation7] sm:$0x3]
    %v175 = vlaneseq
    %v176 = vshrl.u32 %v175, 7
    %v177 = vsub.s32 0, %v176
    %v178 = vrot.slane %v173, %v177
    %v179 = vlaneseq
    %v180 = vshrl.u32 %v179, 7
    %v181 = vsub.s32 1, %v180
    %v182 = vrot.slane %v173, %v181
    %v249 = vunpack.c.l.b16 %v109
    %v250 = vunpack.c.h.b16 %v109
    %v251 = vunpack.c.l.b16 %v110
    %v252 = vunpack.c.h.b16 %v110
    %v253 = vunpack.c.l.b16 %v111
    %v254 = vunpack.c.h.b16 %v111
    %v255 = vunpack.c.l.b16 %v112
    %v256 = vunpack.c.h.b16 %v112
    %v257 = vunpack.c.l.b16 %v113
    %v258 = vunpack.c.h.b16 %v113
    %v259 = vunpack.c.l.b16 %v114
    %v260 = vunpack.c.h.b16 %v114
    %v261 = vunpack.c.l.b16 %v115
    %v262 = vunpack.c.h.b16 %v115
    %v263 = vunpack.c.l.b16 %v116
    %v264 = vunpack.c.h.b16 %v116
    %v265 = vunpack.c.l.b16 %v117
    %v266 = vunpack.c.h.b16 %v117
    %v267 = vunpack.c.l.b16 %v118
    %v268 = vunpack.c.h.b16 %v118
    %v269 = vunpack.c.l.b16 %v119
    %v270 = vunpack.c.h.b16 %v119
    %v271 = vunpack.c.l.b16 %v120
    %v272 = vunpack.c.h.b16 %v120
    %v273 = vunpack.c.l.b16 %v121
    %v274 = vunpack.c.h.b16 %v121
    %v275 = vunpack.c.l.b16 %v122
    %v276 = vunpack.c.h.b16 %v122
    %v277 = vunpack.c.l.b16 %v123
    %v278 = vunpack.c.h.b16 %v123
    %v279 = vunpack.c.l.b16 %v124
    %v280 = vunpack.c.h.b16 %v124
    %v281 = vunpack.c.l.b16 %v125
    %v282 = vunpack.c.h.b16 %v125
    %v283 = vunpack.c.l.b16 %v126
    %v284 = vunpack.c.h.b16 %v126
    %v285 = vunpack.c.l.b16 %v127
    %v286 = vunpack.c.h.b16 %v127
    %v287 = vunpack.c.l.b16 %v128
    %v288 = vunpack.c.h.b16 %v128
    %v289 = vunpack.c.l.b16 %v129
    %v290 = vunpack.c.h.b16 %v129
    %v291 = vunpack.c.l.b16 %v130
    %v292 = vunpack.c.h.b16 %v130
    %v293 = vunpack.c.l.b16 %v131
    %v294 = vunpack.c.h.b16 %v131
    %v295 = vunpack.c.l.b16 %v132
    %v296 = vunpack.c.h.b16 %v132
    %v297 = vunpack.c.l.b16 %v133
    %v298 = vunpack.c.h.b16 %v133
    %v299 = vunpack.c.l.b16 %v134
    %v300 = vunpack.c.h.b16 %v134
    %v301 = vunpack.c.l.b16 %v135
    %v302 = vunpack.c.h.b16 %v135
    %v303 = vunpack.c.l.b16 %v136
    %v304 = vunpack.c.h.b16 %v136
    %v305 = vunpack.c.l.b16 %v137
    %v306 = vunpack.c.h.b16 %v137
    %v307 = vunpack.c.l.b16 %v138
    %v308 = vunpack.c.h.b16 %v138
    %v309 = vunpack.c.l.b16 %v139
    %v310 = vunpack.c.h.b16 %v139
    %v311 = vunpack.c.l.b16 %v140
    %v312 = vunpack.c.h.b16 %v140
    %v313 = vunpack.c.l.b16 %v141
    %v314 = vunpack.c.h.b16 %v141
    %v315 = vunpack.c.l.b16 %v142
    %v316 = vunpack.c.h.b16 %v142
    %v317 = vunpack.c.l.b16 %v143
    %v318 = vunpack.c.h.b16 %v143
    %v319 = vunpack.c.l.b16 %v144
    %v320 = vunpack.c.h.b16 %v144
    %v321 = vunpack.c.l.b16 %v145
    %v322 = vunpack.c.h.b16 %v145
    %v323 = vunpack.c.l.b16 %v146
    %v324 = vunpack.c.h.b16 %v146
    %v325 = vunpack.c.l.b16 %v147
    %v326 = vunpack.c.h.b16 %v147
    %v327 = vunpack.c.l.b16 %v148
    %v328 = vunpack.c.h.b16 %v148
    %v329 = vunpack.c.l.b16 %v149
    %v330 = vunpack.c.h.b16 %v149
    %v331 = vunpack.c.l.b16 %v150
    %v332 = vunpack.c.h.b16 %v150
    %v333 = vunpack.c.l.b16 %v151
    %v334 = vunpack.c.h.b16 %v151
    %v335 = vunpack.c.l.b16 %v152
    %v336 = vunpack.c.h.b16 %v152
    %v337 = vunpack.c.l.b16 %v153
    %v338 = vunpack.c.h.b16 %v153
    %v339 = vunpack.c.l.b16 %v154
    %v340 = vunpack.c.h.b16 %v154
    %v341 = vunpack.c.l.b16 %v155
    %v342 = vunpack.c.h.b16 %v155
    %v343 = vunpack.c.l.b16 %v156
    %v344 = vunpack.c.h.b16 %v156
    %v345 = vunpack.c.l.b16 %v157
    %v346 = vunpack.c.h.b16 %v157
    %v347 = vunpack.c.l.b16 %v158
    %v348 = vunpack.c.h.b16 %v158
    %v349 = vunpack.c.l.b16 %v159
    %v350 = vunpack.c.h.b16 %v159
    %v351 = vunpack.c.l.b16 %v160
    %v352 = vunpack.c.h.b16 %v160
    %v353 = vunpack.c.l.b16 %v161
    %v354 = vunpack.c.h.b16 %v161
    %v355 = vunpack.c.l.b16 %v162
    %v356 = vunpack.c.h.b16 %v162
    %v357 = vunpack.c.l.b16 %v163
    %v358 = vunpack.c.h.b16 %v163
    %v359 = vunpack.c.l.b16 %v164
    %v360 = vunpack.c.h.b16 %v164
    %v361 = vunpack.c.l.b16 %v165
    %v362 = vunpack.c.h.b16 %v165
    %v363 = vunpack.c.l.b16 %v166
    %v364 = vunpack.c.h.b16 %v166
    %v365 = vunpack.c.l.b16 %v167
    %v366 = vunpack.c.h.b16 %v167
    %v367 = vunpack.c.l.b16 %v168
    %v368 = vunpack.c.h.b16 %v168
    %v369 = vunpack.c.l.b16 %v169
    %v370 = vunpack.c.h.b16 %v169
    %v371 = vunpack.c.l.b16 %v170
    %v372 = vunpack.c.h.b16 %v170
    %v373 = vunpack.c.l.b16 %v171
    %v374 = vunpack.c.h.b16 %v171
    %v375 = vunpack.c.l.b16 %v172
    %v376 = vunpack.c.h.b16 %v172
    %v377 = vpack.c.b16 %v251, %v249
    %v378 = vpack.c.b16 %v252, %v250
    %v379 = vpack.c.b16 %v255, %v253
    %v380 = vpack.c.b16 %v256, %v254
    %v381 = vpack.c.b16 %v259, %v257
    %v382 = vpack.c.b16 %v260, %v258
    %v383 = vpack.c.b16 %v263, %v261
    %v384 = vpack.c.b16 %v264, %v262
    %v385 = vpack.c.b16 %v267, %v265
    %v386 = vpack.c.b16 %v268, %v266
    %v387 = vpack.c.b16 %v271, %v269
    %v388 = vpack.c.b16 %v272, %v270
    %v389 = vpack.c.b16 %v275, %v273
    %v390 = vpack.c.b16 %v276, %v274
    %v391 = vpack.c.b16 %v279, %v277
    %v392 = vpack.c.b16 %v280, %v278
    %v393 = vpack.c.b16 %v283, %v281
    %v394 = vpack.c.b16 %v284, %v282
    %v395 = vpack.c.b16 %v287, %v285
    %v396 = vpack.c.b16 %v288, %v286
    %v397 = vpack.c.b16 %v291, %v289
    %v398 = vpack.c.b16 %v292, %v290
    %v399 = vpack.c.b16 %v295, %v293
    %v400 = vpack.c.b16 %v296, %v294
    %v401 = vpack.c.b16 %v299, %v297
    %v402 = vpack.c.b16 %v300, %v298
    %v403 = vpack.c.b16 %v303, %v301
    %v404 = vpack.c.b16 %v304, %v302
    %v405 = vpack.c.b16 %v307, %v305
    %v406 = vpack.c.b16 %v308, %v306
    %v407 = vpack.c.b16 %v311, %v309
    %v408 = vpack.c.b16 %v312, %v310
    %v409 = vpack.c.b16 %v315, %v313
    %v410 = vpack.c.b16 %v316, %v314
    %v411 = vpack.c.b16 %v319, %v317
    %v412 = vpack.c.b16 %v320, %v318
    %v413 = vpack.c.b16 %v323, %v321
    %v414 = vpack.c.b16 %v324, %v322
    %v415 = vpack.c.b16 %v327, %v325
    %v416 = vpack.c.b16 %v328, %v326
    %v417 = vpack.c.b16 %v331, %v329
    %v418 = vpack.c.b16 %v332, %v330
    %v419 = vpack.c.b16 %v335, %v333
    %v420 = vpack.c.b16 %v336, %v334
    %v421 = vpack.c.b16 %v339, %v337
    %v422 = vpack.c.b16 %v340, %v338
    %v423 = vpack.c.b16 %v343, %v341
    %v424 = vpack.c.b16 %v344, %v342
    %v425 = vpack.c.b16 %v347, %v345
    %v426 = vpack.c.b16 %v348, %v346
    %v427 = vpack.c.b16 %v351, %v349
    %v428 = vpack.c.b16 %v352, %v350
    %v429 = vpack.c.b16 %v355, %v353
    %v430 = vpack.c.b16 %v356, %v354
    %v431 = vpack.c.b16 %v359, %v357
    %v432 = vpack.c.b16 %v360, %v358
    %v433 = vpack.c.b16 %v363, %v361
    %v434 = vpack.c.b16 %v364, %v362
    %v435 = vpack.c.b16 %v367, %v365
    %v436 = vpack.c.b16 %v368, %v366
    %v437 = vpack.c.b16 %v371, %v369
    %v438 = vpack.c.b16 %v372, %v370
    %v439 = vpack.c.b16 %v375, %v373
    %v440 = vpack.c.b16 %v376, %v374
    %505 = vmatprep.subr.bf16.mxu0 %v392
    %506 = vmatpush1.bf16.msra.mxu0 %v391
    %507 = vmatprep.subr.bf16.mxu0 %v390
    %508 = vmatpush1.bf16.msra.mxu0 %v389
    %509 = vmatprep.subr.bf16.mxu0 %v388
    %510 = vmatpush1.bf16.msra.mxu0 %v387
    %511 = vmatprep.subr.bf16.mxu0 %v386
    %512 = vmatpush1.bf16.msra.mxu0 %v385
    %513 = vmatprep.subr.bf16.mxu0 %v384
    %514 = vmatpush1.bf16.msra.mxu0 %v383
    %515 = vmatprep.subr.bf16.mxu0 %v382
    %516 = vmatpush1.bf16.msra.mxu0 %v381
    %517 = vmatprep.subr.bf16.mxu0 %v380
    %518 = vmatpush1.bf16.msra.mxu0 %v379
    %519 = vmatprep.subr.bf16.mxu0 %v378
    %520 = vmatpush1.bf16.msra.mxu0 %v377
    %521 = vmatprep.subr.bf16.mxu0 %v408
    %522 = vmatpush2.bf16.msra.mxu0 %v407
    %523 = vmatprep.subr.bf16.mxu0 %v406
    %524 = vmatpush2.bf16.msra.mxu0 %v405
    %525 = vmatprep.subr.bf16.mxu0 %v404
    %526 = vmatpush2.bf16.msra.mxu0 %v403
    %527 = vmatprep.subr.bf16.mxu0 %v402
    %528 = vmatpush2.bf16.msra.mxu0 %v401
    %529 = vmatprep.subr.bf16.mxu0 %v400
    %530 = vmatpush2.bf16.msra.mxu0 %v399
    %531 = vmatprep.subr.bf16.mxu0 %v398
    %532 = vmatpush2.bf16.msra.mxu0 %v397
    %533 = vmatprep.subr.bf16.mxu0 %v396
    %534 = vmatpush2.bf16.msra.mxu0 %v395
    %535 = vmatprep.subr.bf16.mxu0 %v394
    %536 = vmatpush2.bf16.msra.mxu0 %v393
    %537 = vmatprep.mubr.bf16.mxu0 %v106
    %538 = vmatmul.mubr.bf16.gmra.mxu0 %v105
    %v539 = vpop.f32.mrf.mxu0
    %v540 = vadd.f32 %v178, %v539
    %v541 = vpop.f32.mrf.mxu0
    %v542 = vadd.f32 %v182, %v541
    %v543 = vpop.f32.mrf.mxu0
    %v544 = vadd.f32 %v178, %v543
    %v545 = vpop.f32.mrf.mxu0
    %v546 = vadd.f32 %v182, %v545
    %547 = vdwg.mxu0
    %548 = vmatprep.subr.bf16.mxu0 %v424
    %549 = vmatpush1.bf16.msra.mxu0 %v423
    %550 = vmatprep.subr.bf16.mxu0 %v422
    %551 = vmatpush1.bf16.msra.mxu0 %v421
    %552 = vmatprep.subr.bf16.mxu0 %v420
    %553 = vmatpush1.bf16.msra.mxu0 %v419
    %554 = vmatprep.subr.bf16.mxu0 %v418
    %555 = vmatpush1.bf16.msra.mxu0 %v417
    %556 = vmatprep.subr.bf16.mxu0 %v416
    %557 = vmatpush1.bf16.msra.mxu0 %v415
    %558 = vmatprep.subr.bf16.mxu0 %v414
    %559 = vmatpush1.bf16.msra.mxu0 %v413
    %560 = vmatprep.subr.bf16.mxu0 %v412
    %561 = vmatpush1.bf16.msra.mxu0 %v411
    %562 = vmatprep.subr.bf16.mxu0 %v410
    %563 = vmatpush1.bf16.msra.mxu0 %v409
    %564 = vmatprep.subr.bf16.mxu0 %v440
    %565 = vmatpush2.bf16.msra.mxu0 %v439
    %566 = vmatprep.subr.bf16.mxu0 %v438
    %567 = vmatpush2.bf16.msra.mxu0 %v437
    %568 = vmatprep.subr.bf16.mxu0 %v436
    %569 = vmatpush2.bf16.msra.mxu0 %v435
    %570 = vmatprep.subr.bf16.mxu0 %v434
    %571 = vmatpush2.bf16.msra.mxu0 %v433
    %572 = vmatprep.subr.bf16.mxu0 %v432
    %573 = vmatpush2.bf16.msra.mxu0 %v431
    %574 = vmatprep.subr.bf16.mxu0 %v430
    %575 = vmatpush2.bf16.msra.mxu0 %v429
    %576 = vmatprep.subr.bf16.mxu0 %v428
    %577 = vmatpush2.bf16.msra.mxu0 %v427
    %578 = vmatprep.subr.bf16.mxu0 %v426
    %579 = vmatpush2.bf16.msra.mxu0 %v425
    %580 = vmatprep.mubr.bf16.mxu0 %v108
    %581 = vmatmul.mubr.bf16.gmra.mxu0 %v107
    %v582 = vpop.f32.mrf.mxu0
    %v583 = vadd.f32 %v540, %v582
    %v584 = vpop.f32.mrf.mxu0
    %v585 = vadd.f32 %v542, %v584
    %v586 = vpop.f32.mrf.mxu0
    %v587 = vadd.f32 %v544, %v586
    %v588 = vpop.f32.mrf.mxu0
    %v589 = vadd.f32 %v546, %v588
    %590 = vdwg.mxu0
    %v591 = vmax.f32 %v583, 0.0
    %v592 = vmax.f32 %v585, 0.0
    %v593 = vmax.f32 %v587, 0.0
    %v594 = vmax.f32 %v589, 0.0
    %595 = vst [vmem:[#allocation12] sm:$0xff] %v591
    %596 = vst [vmem:[#allocation12 + $0x8] sm:$0xff] %v592
    %597 = vst [vmem:[#allocation12 + $0x10] sm:$0xff] %v593
    %598 = vst [vmem:[#allocation12 + $0x18] sm:$0xff] %v594
    %v599 = vpack.c.bf16 %v593, %v591
    %v600 = vpack.c.bf16 %v594, %v592
    %v601 = vld [vmem:[#allocation8] sm:$0xff]
    %v602 = vld [vmem:[#allocation8 + $0x8] sm:$0xf]
    %v603 = vld [vmem:[#allocation8 + $0xc] sm:$0xff]
    %v604 = vld [vmem:[#allocation8 + $0x14] sm:$0xf]
    %v605 = vld [vmem:[#allocation8 + $0x18] sm:$0xff]
    %v606 = vld [vmem:[#allocation8 + $0x20] sm:$0xf]
    %v607 = vld [vmem:[#allocation8 + $0x24] sm:$0xff]
    %v608 = vld [vmem:[#allocation8 + $0x2c] sm:$0xf]
    %v609 = vld [vmem:[#allocation8 + $0x30] sm:$0xff]
    %v610 = vld [vmem:[#allocation8 + $0x38] sm:$0xf]
    %v611 = vld [vmem:[#allocation8 + $0x3c] sm:$0xff]
    %v612 = vld [vmem:[#allocation8 + $0x44] sm:$0xf]
    %v613 = vld [vmem:[#allocation8 + $0x48] sm:$0xff]
    %v614 = vld [vmem:[#allocation8 + $0x50] sm:$0xf]
    %v615 = vld [vmem:[#allocation8 + $0x54] sm:$0xff]
    %v616 = vld [vmem:[#allocation8 + $0x5c] sm:$0xf]
    %v617 = vld [vmem:[#allocation8 + $0x60] sm:$0xff]
    %v618 = vld [vmem:[#allocation8 + $0x68] sm:$0xf]
    %v619 = vld [vmem:[#allocation8 + $0x6c] sm:$0xff]
    %v620 = vld [vmem:[#allocation8 + $0x74] sm:$0xf]
    %v621 = vld [vmem:[#allocation8 + $0x78] sm:$0xff]
    %v622 = vld [vmem:[#allocation8 + $0x80] sm:$0xf]
    %v623 = vld [vmem:[#allocation8 + $0x84] sm:$0xff]
    %v624 = vld [vmem:[#allocation8 + $0x8c] sm:$0xf]
    %v625 = vld [vmem:[#allocation8 + $0x90] sm:$0xff]
    %v626 = vld [vmem:[#allocation8 + $0x98] sm:$0xf]
    %v627 = vld [vmem:[#allocation8 + $0x9c] sm:$0xff]
    %v628 = vld [vmem:[#allocation8 + $0xa4] sm:$0xf]
    %v629 = vld [vmem:[#allocation8 + $0xa8] sm:$0xff]
    %v630 = vld [vmem:[#allocation8 + $0xb0] sm:$0xf]
    %v631 = vld [vmem:[#allocation8 + $0xb4] sm:$0xff]
    %v632 = vld [vmem:[#allocation8 + $0xbc] sm:$0xf]
    %v633 = vld [vmem:[#allocation8 + $0xc0] sm:$0xff]
    %v634 = vld [vmem:[#allocation8 + $0xc8] sm:$0xf]
    %v635 = vld [vmem:[#allocation8 + $0xcc] sm:$0xff]
    %v636 = vld [vmem:[#allocation8 + $0xd4] sm:$0xf]
    %v637 = vld [vmem:[#allocation8 + $0xd8] sm:$0xff]
    %v638 = vld [vmem:[#allocation8 + $0xe0] sm:$0xf]
    %v639 = vld [vmem:[#allocation8 + $0xe4] sm:$0xff]
    %v640 = vld [vmem:[#allocation8 + $0xec] sm:$0xf]
    %v641 = vld [vmem:[#allocation8 + $0xf0] sm:$0xff]
    %v642 = vld [vmem:[#allocation8 + $0xf8] sm:$0xf]
    %v643 = vld [vmem:[#allocation8 + $0xfc] sm:$0xff]
    %v644 = vld [vmem:[#allocation8 + $0x104] sm:$0xf]
    %v645 = vld [vmem:[#allocation8 + $0x108] sm:$0xff]
    %v646 = vld [vmem:[#allocation8 + $0x110] sm:$0xf]
    %v647 = vld [vmem:[#allocation8 + $0x114] sm:$0xff]
    %v648 = vld [vmem:[#allocation8 + $0x11c] sm:$0xf]
    %v649 = vld [vmem:[#allocation8 + $0x120] sm:$0xff]
    %v650 = vld [vmem:[#allocation8 + $0x128] sm:$0xf]
    %v651 = vld [vmem:[#allocation8 + $0x12c] sm:$0xff]
    %v652 = vld [vmem:[#allocation8 + $0x134] sm:$0xf]
    %v653 = vld [vmem:[#allocation8 + $0x138] sm:$0xff]
    %v654 = vld [vmem:[#allocation8 + $0x140] sm:$0xf]
    %v655 = vld [vmem:[#allocation8 + $0x144] sm:$0xff]
    %v656 = vld [vmem:[#allocation8 + $0x14c] sm:$0xf]
    %v657 = vld [vmem:[#allocation8 + $0x150] sm:$0xff]
    %v658 = vld [vmem:[#allocation8 + $0x158] sm:$0xf]
    %v659 = vld [vmem:[#allocation8 + $0x15c] sm:$0xff]
    %v660 = vld [vmem:[#allocation8 + $0x164] sm:$0xf]
    %v661 = vld [vmem:[#allocation8 + $0x168] sm:$0xff]
    %v662 = vld [vmem:[#allocation8 + $0x170] sm:$0xf]
    %v663 = vld [vmem:[#allocation8 + $0x174] sm:$0xff]
    %v664 = vld [vmem:[#allocation8 + $0x17c] sm:$0xf]
    %v665 = vld [vmem:[%s4] sm:$0x7]
    %v667 = vlaneseq
    %v668 = vshrl.u32 %v667, 7
    %v669 = vsub.s32 0, %v668
    %v670 = vrot.slane %v665, %v669
    %v671 = vlaneseq
    %v672 = vshrl.u32 %v671, 7
    %v673 = vsub.s32 1, %v672
    %v674 = vrot.slane %v665, %v673
    %v675 = vlaneseq
    %v676 = vshrl.u32 %v675, 7
    %v677 = vsub.s32 2, %v676
    %v678 = vrot.slane %v665, %v677
    %v746 = vunpack.c.l.b16 %v601
    %v747 = vunpack.c.h.b16 %v601
    %v748 = vunpack.c.l.b16 %v602
    %v749 = vunpack.c.l.b16 %v603
    %v750 = vunpack.c.h.b16 %v603
    %v751 = vunpack.c.l.b16 %v604
    %v752 = vunpack.c.l.b16 %v605
    %v753 = vunpack.c.h.b16 %v605
    %v754 = vunpack.c.l.b16 %v606
    %v755 = vunpack.c.l.b16 %v607
    %v756 = vunpack.c.h.b16 %v607
    %v757 = vunpack.c.l.b16 %v608
    %v758 = vunpack.c.l.b16 %v609
    %v759 = vunpack.c.h.b16 %v609
    %v760 = vunpack.c.l.b16 %v610
    %v761 = vunpack.c.l.b16 %v611
    %v762 = vunpack.c.h.b16 %v611
    %v763 = vunpack.c.l.b16 %v612
    %v764 = vunpack.c.l.b16 %v613
    %v765 = vunpack.c.h.b16 %v613
    %v766 = vunpack.c.l.b16 %v614
    %v767 = vunpack.c.l.b16 %v615
    %v768 = vunpack.c.h.b16 %v615
    %v769 = vunpack.c.l.b16 %v616
    %v770 = vunpack.c.l.b16 %v617
    %v771 = vunpack.c.h.b16 %v617
    %v772 = vunpack.c.l.b16 %v618
    %v773 = vunpack.c.l.b16 %v619
    %v774 = vunpack.c.h.b16 %v619
    %v775 = vunpack.c.l.b16 %v620
    %v776 = vunpack.c.l.b16 %v621
    %v777 = vunpack.c.h.b16 %v621
    %v778 = vunpack.c.l.b16 %v622
    %v779 = vunpack.c.l.b16 %v623
    %v780 = vunpack.c.h.b16 %v623
    %v781 = vunpack.c.l.b16 %v624
    %v782 = vunpack.c.l.b16 %v625
    %v783 = vunpack.c.h.b16 %v625
    %v784 = vunpack.c.l.b16 %v626
    %v785 = vunpack.c.l.b16 %v627
    %v786 = vunpack.c.h.b16 %v627
    %v787 = vunpack.c.l.b16 %v628
    %v788 = vunpack.c.l.b16 %v629
    %v789 = vunpack.c.h.b16 %v629
    %v790 = vunpack.c.l.b16 %v630
    %v791 = vunpack.c.l.b16 %v631
    %v792 = vunpack.c.h.b16 %v631
    %v793 = vunpack.c.l.b16 %v632
    %v794 = vunpack.c.l.b16 %v633
    %v795 = vunpack.c.h.b16 %v633
    %v796 = vunpack.c.l.b16 %v634
    %v797 = vunpack.c.l.b16 %v635
    %v798 = vunpack.c.h.b16 %v635
    %v799 = vunpack.c.l.b16 %v636
    %v800 = vunpack.c.l.b16 %v637
    %v801 = vunpack.c.h.b16 %v637
    %v802 = vunpack.c.l.b16 %v638
    %v803 = vunpack.c.l.b16 %v639
    %v804 = vunpack.c.h.b16 %v639
    %v805 = vunpack.c.l.b16 %v640
    %v806 = vunpack.c.l.b16 %v641
    %v807 = vunpack.c.h.b16 %v641
    %v808 = vunpack.c.l.b16 %v642
    %v809 = vunpack.c.l.b16 %v643
    %v810 = vunpack.c.h.b16 %v643
    %v811 = vunpack.c.l.b16 %v644
    %v812 = vunpack.c.l.b16 %v645
    %v813 = vunpack.c.h.b16 %v645
    %v814 = vunpack.c.l.b16 %v646
    %v815 = vunpack.c.l.b16 %v647
    %v816 = vunpack.c.h.b16 %v647
    %v817 = vunpack.c.l.b16 %v648
    %v818 = vunpack.c.l.b16 %v649
    %v819 = vunpack.c.h.b16 %v649
    %v820 = vunpack.c.l.b16 %v650
    %v821 = vunpack.c.l.b16 %v651
    %v822 = vunpack.c.h.b16 %v651
    %v823 = vunpack.c.l.b16 %v652
    %v824 = vunpack.c.l.b16 %v653
    %v825 = vunpack.c.h.b16 %v653
    %v826 = vunpack.c.l.b16 %v654
    %v827 = vunpack.c.l.b16 %v655
    %v828 = vunpack.c.h.b16 %v655
    %v829 = vunpack.c.l.b16 %v656
    %v830 = vunpack.c.l.b16 %v657
    %v831 = vunpack.c.h.b16 %v657
    %v832 = vunpack.c.l.b16 %v658
    %v833 = vunpack.c.l.b16 %v659
    %v834 = vunpack.c.h.b16 %v659
    %v835 = vunpack.c.l.b16 %v660
    %v836 = vunpack.c.l.b16 %v661
    %v837 = vunpack.c.h.b16 %v661
    %v838 = vunpack.c.l.b16 %v662
    %v839 = vunpack.c.l.b16 %v663
    %v840 = vunpack.c.h.b16 %v663
    %v841 = vunpack.c.l.b16 %v664
    %v842 = vpack.c.b16 %v749, %v746
    %v843 = vpack.c.b16 %v750, %v747
    %v844 = vpack.c.b16 %v751, %v748
    %v845 = vpack.c.b16 %v755, %v752
    %v846 = vpack.c.b16 %v756, %v753
    %v847 = vpack.c.b16 %v757, %v754
    %v848 = vpack.c.b16 %v761, %v758
    %v849 = vpack.c.b16 %v762, %v759
    %v850 = vpack.c.b16 %v763, %v760
    %v851 = vpack.c.b16 %v767, %v764
    %v852 = vpack.c.b16 %v768, %v765
    %v853 = vpack.c.b16 %v769, %v766
    %v854 = vpack.c.b16 %v773, %v770
    %v855 = vpack.c.b16 %v774, %v771
    %v856 = vpack.c.b16 %v775, %v772
    %v857 = vpack.c.b16 %v779, %v776
    %v858 = vpack.c.b16 %v780, %v777
    %v859 = vpack.c.b16 %v781, %v778
    %v860 = vpack.c.b16 %v785, %v782
    %v861 = vpack.c.b16 %v786, %v783
    %v862 = vpack.c.b16 %v787, %v784
    %v863 = vpack.c.b16 %v791, %v788
    %v864 = vpack.c.b16 %v792, %v789
    %v865 = vpack.c.b16 %v793, %v790
    %v866 = vpack.c.b16 %v797, %v794
    %v867 = vpack.c.b16 %v798, %v795
    %v868 = vpack.c.b16 %v799, %v796
    %v869 = vpack.c.b16 %v803, %v800
    %v870 = vpack.c.b16 %v804, %v801
    %v871 = vpack.c.b16 %v805, %v802
    %v872 = vpack.c.b16 %v809, %v806
    %v873 = vpack.c.b16 %v810, %v807
    %v874 = vpack.c.b16 %v811, %v808
    %v875 = vpack.c.b16 %v815, %v812
    %v876 = vpack.c.b16 %v816, %v813
    %v877 = vpack.c.b16 %v817, %v814
    %v878 = vpack.c.b16 %v821, %v818
    %v879 = vpack.c.b16 %v822, %v819
    %v880 = vpack.c.b16 %v823, %v820
    %v881 = vpack.c.b16 %v827, %v824
    %v882 = vpack.c.b16 %v828, %v825
    %v883 = vpack.c.b16 %v829, %v826
    %v884 = vpack.c.b16 %v833, %v830
    %v885 = vpack.c.b16 %v834, %v831
    %v886 = vpack.c.b16 %v835, %v832
    %v887 = vpack.c.b16 %v839, %v836
    %v888 = vpack.c.b16 %v840, %v837
    %v889 = vpack.c.b16 %v841, %v838
    %938 = vmatprep.subr.bf16.mxu0 %v864
    %939 = vmatpush1.bf16.msra.mxu0 %v863
    %940 = vmatprep.subr.bf16.mxu0 %v861
    %941 = vmatpush1.bf16.msra.mxu0 %v860
    %942 = vmatprep.subr.bf16.mxu0 %v858
    %943 = vmatpush1.bf16.msra.mxu0 %v857
    %944 = vmatprep.subr.bf16.mxu0 %v855
    %945 = vmatpush1.bf16.msra.mxu0 %v854
    %946 = vmatprep.subr.bf16.mxu0 %v852
    %947 = vmatpush1.bf16.msra.mxu0 %v851
    %948 = vmatprep.subr.bf16.mxu0 %v849
    %949 = vmatpush1.bf16.msra.mxu0 %v848
    %950 = vmatprep.subr.bf16.mxu0 %v846
    %951 = vmatpush1.bf16.msra.mxu0 %v845
    %952 = vmatprep.subr.bf16.mxu0 %v843
    %953 = vmatpush1.bf16.msra.mxu0 %v842
    %954 = vmatprep.subr.bf16.mxu0 %v888
    %955 = vmatpush2.bf16.msra.mxu0 %v887
    %956 = vmatprep.subr.bf16.mxu0 %v885
    %957 = vmatpush2.bf16.msra.mxu0 %v884
    %958 = vmatprep.subr.bf16.mxu0 %v882
    %959 = vmatpush2.bf16.msra.mxu0 %v881
    %960 = vmatprep.subr.bf16.mxu0 %v879
    %961 = vmatpush2.bf16.msra.mxu0 %v878
    %962 = vmatprep.subr.bf16.mxu0 %v876
    %963 = vmatpush2.bf16.msra.mxu0 %v875
    %964 = vmatprep.subr.bf16.mxu0 %v873
    %965 = vmatpush2.bf16.msra.mxu0 %v872
    %966 = vmatprep.subr.bf16.mxu0 %v870
    %967 = vmatpush2.bf16.msra.mxu0 %v869
    %968 = vmatprep.subr.bf16.mxu0 %v867
    %969 = vmatpush2.bf16.msra.mxu0 %v866
    %970 = vmatprep.mubr.bf16.mxu0 %v600
    %971 = vmatmul.mubr.bf16.gmra.mxu0 %v599
    %v972 = vpop.f32.mrf.mxu0
    %v973 = vadd.f32 %v670, %v972
    %v974 = vpop.f32.mrf.mxu0
    %v975 = vadd.f32 %v674, %v974
    %v976 = vpop.f32.mrf.mxu0
    %v977 = vadd.f32 %v670, %v976
    %v978 = vpop.f32.mrf.mxu0
    %v979 = vadd.f32 %v674, %v978
    %980 = vdwg.mxu0
    %981 = vmatprep.subr.bf16.mxu0 0
    %982 = vmatpush1.bf16.msra.mxu0 %v865
    %983 = vmatprep.subr.bf16.mxu0 0
    %984 = vmatpush1.bf16.msra.mxu0 %v862
    %985 = vmatprep.subr.bf16.mxu0 0
    %986 = vmatpush1.bf16.msra.mxu0 %v859
    %987 = vmatprep.subr.bf16.mxu0 0
    %988 = vmatpush1.bf16.msra.mxu0 %v856
    %989 = vmatprep.subr.bf16.mxu0 0
    %990 = vmatpush1.bf16.msra.mxu0 %v853
    %991 = vmatprep.subr.bf16.mxu0 0
    %992 = vmatpush1.bf16.msra.mxu0 %v850
    %993 = vmatprep.subr.bf16.mxu0 0
    %994 = vmatpush1.bf16.msra.mxu0 %v847
    %995 = vmatprep.subr.bf16.mxu0 0
    %996 = vmatpush1.bf16.msra.mxu0 %v844
    %997 = vmatprep.subr.bf16.mxu0 0
    %998 = vmatpush2.bf16.msra.mxu0 %v889
    %999 = vmatprep.subr.bf16.mxu0 0
    %1000 = vmatpush2.bf16.msra.mxu0 %v886
    %1001 = vmatprep.subr.bf16.mxu0 0
    %1002 = vmatpush2.bf16.msra.mxu0 %v883
    %1003 = vmatprep.subr.bf16.mxu0 0
    %1004 = vmatpush2.bf16.msra.mxu0 %v880
    %1005 = vmatprep.subr.bf16.mxu0 0
    %1006 = vmatpush2.bf16.msra.mxu0 %v877
    %1007 = vmatprep.subr.bf16.mxu0 0
    %1008 = vmatpush2.bf16.msra.mxu0 %v874
    %1009 = vmatprep.subr.bf16.mxu0 0
    %1010 = vmatpush2.bf16.msra.mxu0 %v871
    %1011 = vmatprep.subr.bf16.mxu0 0
    %1012 = vmatpush2.bf16.msra.mxu0 %v868
    %1013 = vmatprep.mubr.bf16.mxu0 %v600
    %1014 = vmatmul.mubr.bf16.gmra.mxu0 %v599
    %v1015 = vpop.f32.mrf.mxu0
    %v1016 = vadd.f32 %v678, %v1015
    %v1017 = vpop.f32.mrf.mxu0
    %v1018 = vpop.f32.mrf.mxu0
    %v1019 = vadd.f32 %v678, %v1018
    %v1020 = vpop.f32.mrf.mxu0
    %1021 = vdwg.mxu0
    %v1022 = vld [vmem:[#allocation10] sm:$0xff]
    %v1023 = vld [vmem:[#allocation10 + $0x8] sm:$0xff]
    %v1024 = vld [vmem:[#allocation10 + $0x10] sm:$0xff]
    %v1025 = vld [vmem:[#allocation10 + $0x18] sm:$0xff]
    %v1026 = vld [vmem:[#allocation10 + $0x20] sm:$0xff]
    %v1027 = vld [vmem:[#allocation10 + $0x28] sm:$0xff]
    %v1028 = vld [vmem:[#allocation10 + $0x30] sm:$0xff]
    %v1029 = vld [vmem:[#allocation10 + $0x38] sm:$0xff]
    %v1030 = vld [vmem:[#allocation10 + $0x40] sm:$0xff]
    %v1031 = vld [vmem:[#allocation10 + $0x48] sm:$0xff]
    %v1032 = vld [vmem:[#allocation10 + $0x50] sm:$0xff]
    %v1033 = vld [vmem:[#allocation10 + $0x58] sm:$0xff]
    %v1034 = vld [vmem:[#allocation10 + $0x60] sm:$0xff]
    %v1035 = vld [vmem:[#allocation10 + $0x68] sm:$0xff]
    %v1036 = vld [vmem:[#allocation10 + $0x70] sm:$0xff]
    %v1037 = vld [vmem:[#allocation10 + $0x78] sm:$0xff]
    %v1038 = vld [vmem:[#allocation10 + $0x80] sm:$0xff]
    %v1039 = vld [vmem:[#allocation10 + $0x88] sm:$0xff]
    %v1040 = vld [vmem:[#allocation10 + $0x90] sm:$0xff]
    %v1041 = vld [vmem:[#allocation10 + $0x98] sm:$0xff]
    %v1042 = vld [vmem:[#allocation10 + $0xa0] sm:$0xff]
    %v1043 = vld [vmem:[#allocation10 + $0xa8] sm:$0xff]
    %v1044 = vld [vmem:[#allocation10 + $0xb0] sm:$0xff]
    %v1045 = vld [vmem:[#allocation10 + $0xb8] sm:$0xff]
    %v1046 = vld [vmem:[#allocation10 + $0xc0] sm:$0xff]
    %v1047 = vld [vmem:[#allocation10 + $0xc8] sm:$0xff]
    %v1048 = vld [vmem:[#allocation10 + $0xd0] sm:$0xff]
    %v1049 = vld [vmem:[#allocation10 + $0xd8] sm:$0xff]
    %v1050 = vld [vmem:[#allocation10 + $0xe0] sm:$0xff]
    %v1051 = vld [vmem:[#allocation10 + $0xe8] sm:$0xff]
    %v1052 = vld [vmem:[#allocation10 + $0xf0] sm:$0xff]
    %v1053 = vld [vmem:[#allocation10 + $0xf8] sm:$0xff]
    %v1054 = vld [vmem:[#allocation10 + $0x100] sm:$0xff]
    %v1055 = vld [vmem:[#allocation10 + $0x108] sm:$0xff]
    %v1056 = vld [vmem:[#allocation10 + $0x110] sm:$0xff]
    %v1057 = vld [vmem:[#allocation10 + $0x118] sm:$0xff]
    %v1058 = vld [vmem:[#allocation10 + $0x120] sm:$0xff]
    %v1059 = vld [vmem:[#allocation10 + $0x128] sm:$0xff]
    %v1060 = vld [vmem:[#allocation10 + $0x130] sm:$0xff]
    %v1061 = vld [vmem:[#allocation10 + $0x138] sm:$0xff]
    %v1062 = vld [vmem:[#allocation10 + $0x140] sm:$0xff]
    %v1063 = vld [vmem:[#allocation10 + $0x148] sm:$0xff]
    %v1064 = vld [vmem:[#allocation10 + $0x150] sm:$0xff]
    %v1065 = vld [vmem:[#allocation10 + $0x158] sm:$0xff]
    %v1066 = vld [vmem:[#allocation10 + $0x160] sm:$0xff]
    %v1067 = vld [vmem:[#allocation10 + $0x168] sm:$0xff]
    %v1068 = vld [vmem:[#allocation10 + $0x170] sm:$0xff]
    %v1069 = vld [vmem:[#allocation10 + $0x178] sm:$0xff]
    %v1070 = vld [vmem:[%s6] sm:$0x7]
    %v1072 = vlaneseq
    %v1073 = vshrl.u32 %v1072, 7
    %v1074 = vsub.s32 0, %v1073
    %v1075 = vrot.slane %v1070, %v1074
    %v1076 = vlaneseq
    %v1077 = vshrl.u32 %v1076, 7
    %v1078 = vsub.s32 1, %v1077
    %v1079 = vrot.slane %v1070, %v1078
    %v1080 = vlaneseq
    %v1081 = vshrl.u32 %v1080, 7
    %v1082 = vsub.s32 2, %v1081
    %v1083 = vrot.slane %v1070, %v1082
    %1087 = vmatprep.subr.mxu0 %v1068
    %1088 = vmatpush1.msra.mxu0 %v1067
    %1089 = vmatprep.subr.mxu0 %v1065
    %1090 = vmatpush1.msra.mxu0 %v1064
    %1091 = vmatprep.subr.mxu0 %v1062
    %1092 = vmatpush1.msra.mxu0 %v1061
    %1093 = vmatprep.subr.mxu0 %v1059
    %1094 = vmatpush1.msra.mxu0 %v1058
    %1095 = vmatprep.subr.mxu0 %v1056
    %1096 = vmatpush1.msra.mxu0 %v1055
    %1097 = vmatprep.subr.mxu0 %v1053
    %1098 = vmatpush1.msra.mxu0 %v1052
    %1099 = vmatprep.subr.mxu0 %v1050
    %1100 = vmatpush1.msra.mxu0 %v1049
    %1101 = vmatprep.subr.mxu0 %v1047
    %1102 = vmatpush1.msra.mxu0 %v1046
    %1103 = vmatprep.subr.mxu0 %v1044
    %1104 = vmatpush1.msra.mxu0 %v1043
    %1105 = vmatprep.subr.mxu0 %v1041
    %1106 = vmatpush1.msra.mxu0 %v1040
    %1107 = vmatprep.subr.mxu0 %v1038
    %1108 = vmatpush1.msra.mxu0 %v1037
    %1109 = vmatprep.subr.mxu0 %v1035
    %1110 = vmatpush1.msra.mxu0 %v1034
    %1111 = vmatprep.subr.mxu0 %v1032
    %1112 = vmatpush1.msra.mxu0 %v1031
    %1113 = vmatprep.subr.mxu0 %v1029
    %1114 = vmatpush1.msra.mxu0 %v1028
    %1115 = vmatprep.subr.mxu0 %v1026
    %1116 = vmatpush1.msra.mxu0 %v1025
    %1117 = vmatprep.subr.mxu0 %v1023
    %1118 = vmatpush1.msra.mxu0 %v1022
    %1119 = vmatprep.subr.mxu0 0.0
    %1120 = vmatpush2.msra.mxu0 0.0
    %1121 = vmatprep.subr.mxu0 0.0
    %1122 = vmatpush2.msra.mxu0 0.0
    %1123 = vmatprep.subr.mxu0 0.0
    %1124 = vmatpush2.msra.mxu0 0.0
    %1125 = vmatprep.subr.mxu0 0.0
    %1126 = vmatpush2.msra.mxu0 0.0
    %1127 = vmatprep.subr.mxu0 0.0
    %1128 = vmatpush2.msra.mxu0 0.0
    %1129 = vmatprep.subr.mxu0 0.0
    %1130 = vmatpush2.msra.mxu0 0.0
    %1131 = vmatprep.subr.mxu0 0.0
    %1132 = vmatpush2.msra.mxu0 0.0
    %1133 = vmatprep.subr.mxu0 0.0
    %1134 = vmatpush2.msra.mxu0 0.0
    %1135 = vmatprep.subr.mxu0 0.0
    %1136 = vmatpush2.msra.mxu0 0.0
    %1137 = vmatprep.subr.mxu0 0.0
    %1138 = vmatpush2.msra.mxu0 0.0
    %1139 = vmatprep.subr.mxu0 0.0
    %1140 = vmatpush2.msra.mxu0 0.0
    %1141 = vmatprep.subr.mxu0 0.0
    %1142 = vmatpush2.msra.mxu0 0.0
    %1143 = vmatprep.subr.mxu0 0.0
    %1144 = vmatpush2.msra.mxu0 0.0
    %1145 = vmatprep.subr.mxu0 0.0
    %1146 = vmatpush2.msra.mxu0 0.0
    %1147 = vmatprep.subr.mxu0 0.0
    %1148 = vmatpush2.msra.mxu0 0.0
    %1149 = vmatprep.subr.mxu0 0.0
    %1150 = vmatpush2.msra.mxu0 0.0
    %1151 = vmatprep.mubr.f32.mxu0 0.0
    %1152 = vmatmul.mubr.f32.gmra.mxu0 0.0
    %v1153 = vpop.f32.mrf.mxu0
    %v1154 = vadd.f32 %v1075, %v1153
    %v1155 = vpop.f32.mrf.mxu0
    %v1156 = vadd.f32 %v1079, %v1155
    %1157 = vdwg.mxu0
    %1158 = vmatprep.subr.mxu0 0.0
    %1159 = vmatpush1.msra.mxu0 %v1069
    %1160 = vmatprep.subr.mxu0 0.0
    %1161 = vmatpush1.msra.mxu0 %v1066
    %1162 = vmatprep.subr.mxu0 0.0
    %1163 = vmatpush1.msra.mxu0 %v1063
    %1164 = vmatprep.subr.mxu0 0.0
    %1165 = vmatpush1.msra.mxu0 %v1060
    %1166 = vmatprep.subr.mxu0 0.0
    %1167 = vmatpush1.msra.mxu0 %v1057
    %1168 = vmatprep.subr.mxu0 0.0
    %1169 = vmatpush1.msra.mxu0 %v1054
    %1170 = vmatprep.subr.mxu0 0.0
    %1171 = vmatpush1.msra.mxu0 %v1051
    %1172 = vmatprep.subr.mxu0 0.0
    %1173 = vmatpush1.msra.mxu0 %v1048
    %1174 = vmatprep.subr.mxu0 0.0
    %1175 = vmatpush1.msra.mxu0 %v1045
    %1176 = vmatprep.subr.mxu0 0.0
    %1177 = vmatpush1.msra.mxu0 %v1042
    %1178 = vmatprep.subr.mxu0 0.0
    %1179 = vmatpush1.msra.mxu0 %v1039
    %1180 = vmatprep.subr.mxu0 0.0
    %1181 = vmatpush1.msra.mxu0 %v1036
    %1182 = vmatprep.subr.mxu0 0.0
    %1183 = vmatpush1.msra.mxu0 %v1033
    %1184 = vmatprep.subr.mxu0 0.0
    %1185 = vmatpush1.msra.mxu0 %v1030
    %1186 = vmatprep.subr.mxu0 0.0
    %1187 = vmatpush1.msra.mxu0 %v1027
    %1188 = vmatprep.subr.mxu0 0.0
    %1189 = vmatpush1.msra.mxu0 %v1024
    %1190 = vmatprep.subr.mxu0 0.0
    %1191 = vmatpush2.msra.mxu0 0.0
    %1192 = vmatprep.subr.mxu0 0.0
    %1193 = vmatpush2.msra.mxu0 0.0
    %1194 = vmatprep.subr.mxu0 0.0
    %1195 = vmatpush2.msra.mxu0 0.0
    %1196 = vmatprep.subr.mxu0 0.0
    %1197 = vmatpush2.msra.mxu0 0.0
    %1198 = vmatprep.subr.mxu0 0.0
    %1199 = vmatpush2.msra.mxu0 0.0
    %1200 = vmatprep.subr.mxu0 0.0
    %1201 = vmatpush2.msra.mxu0 0.0
    %1202 = vmatprep.subr.mxu0 0.0
    %1203 = vmatpush2.msra.mxu0 0.0
    %1204 = vmatprep.subr.mxu0 0.0
    %1205 = vmatpush2.msra.mxu0 0.0
    %1206 = vmatprep.subr.mxu0 0.0
    %1207 = vmatpush2.msra.mxu0 0.0
    %1208 = vmatprep.subr.mxu0 0.0
    %1209 = vmatpush2.msra.mxu0 0.0
    %1210 = vmatprep.subr.mxu0 0.0
    %1211 = vmatpush2.msra.mxu0 0.0
    %1212 = vmatprep.subr.mxu0 0.0
    %1213 = vmatpush2.msra.mxu0 0.0
    %1214 = vmatprep.subr.mxu0 0.0
    %1215 = vmatpush2.msra.mxu0 0.0
    %1216 = vmatprep.subr.mxu0 0.0
    %1217 = vmatpush2.msra.mxu0 0.0
    %1218 = vmatprep.subr.mxu0 0.0
    %1219 = vmatpush2.msra.mxu0 0.0
    %1220 = vmatprep.subr.mxu0 0.0
    %1221 = vmatpush2.msra.mxu0 0.0
    %1222 = vmatprep.mubr.f32.mxu0 0.0
    %1223 = vmatmul.mubr.f32.gmra.mxu0 0.0
    %v1224 = vpop.f32.mrf.mxu0
    %v1225 = vadd.f32 %v1083, %v1224
    %v1226 = vpop.f32.mrf.mxu0
    %1227 = vdwg.mxu0
    %v1228 = vadd.f32 %v973, %v1154
    %v1229 = vxor.u32 %v1228, 2147483648
    %v1230 = vmul.f32 %v1229, 1.442695
    %v1231 = vpow.pop %v1230
    %v1232 = vadd.f32 %v1231, 1.0
    %v1233 = vrcp.pop %v1232
    %v1234 = vmul.f32 1.0, %v1233
    %v1235 = vadd.f32 %v975, %v1156
    %v1236 = vxor.u32 %v1235, 2147483648
    %v1237 = vmul.f32 %v1236, 1.442695
    %v1238 = vpow.pop %v1237
    %v1239 = vadd.f32 %v1238, 1.0
    %v1240 = vrcp.pop %v1239
    %v1241 = vmul.f32 1.0, %v1240
    %v1242 = vmul.f32 %v1234, %v1225
    %v1243 = vadd.f32 %v1016, %v1242
    %v1244 = vtanh.pop %v1243
    %v1245 = vsub.f32 1.0, %v1241
    %v1246 = vmul.f32 %v1245, %v1244
    %v1247 = vmul.f32 %v1241, 0.0
    %v1248 = vadd.f32 %v1246, %v1247
    %1249 = vmatprep.subr.mxu0 %v1068
    %1250 = vmatpush1.msra.mxu0 %v1067
    %1251 = vmatprep.subr.mxu0 %v1065
    %1252 = vmatpush1.msra.mxu0 %v1064
    %1253 = vmatprep.subr.mxu0 %v1062
    %1254 = vmatpush1.msra.mxu0 %v1061
    %1255 = vmatprep.subr.mxu0 %v1059
    %1256 = vmatpush1.msra.mxu0 %v1058
    %1257 = vmatprep.subr.mxu0 %v1056
    %1258 = vmatpush1.msra.mxu0 %v1055
    %1259 = vmatprep.subr.mxu0 %v1053
    %1260 = vmatpush1.msra.mxu0 %v1052
    %1261 = vmatprep.subr.mxu0 %v1050
    %1262 = vmatpush1.msra.mxu0 %v1049
    %1263 = vmatprep.subr.mxu0 %v1047
    %1264 = vmatpush1.msra.mxu0 %v1046
    %1265 = vmatprep.subr.mxu0 %v1044
    %1266 = vmatpush1.msra.mxu0 %v1043
    %1267 = vmatprep.subr.mxu0 %v1041
    %1268 = vmatpush1.msra.mxu0 %v1040
    %1269 = vmatprep.subr.mxu0 %v1038
    %1270 = vmatpush1.msra.mxu0 %v1037
    %1271 = vmatprep.subr.mxu0 %v1035
    %1272 = vmatpush1.msra.mxu0 %v1034
    %1273 = vmatprep.subr.mxu0 %v1032
    %1274 = vmatpush1.msra.mxu0 %v1031
    %1275 = vmatprep.subr.mxu0 %v1029
    %1276 = vmatpush1.msra.mxu0 %v1028
    %1277 = vmatprep.subr.mxu0 %v1026
    %1278 = vmatpush1.msra.mxu0 %v1025
    %1279 = vmatprep.subr.mxu0 %v1023
    %1280 = vmatpush1.msra.mxu0 %v1022
    %1281 = vmatprep.subr.mxu0 0.0
    %1282 = vmatpush2.msra.mxu0 0.0
    %1283 = vmatprep.subr.mxu0 0.0
    %1284 = vmatpush2.msra.mxu0 0.0
    %1285 = vmatprep.subr.mxu0 0.0
    %1286 = vmatpush2.msra.mxu0 0.0
    %1287 = vmatprep.subr.mxu0 0.0
    %1288 = vmatpush2.msra.mxu0 0.0
    %1289 = vmatprep.subr.mxu0 0.0
    %1290 = vmatpush2.msra.mxu0 0.0
    %1291 = vmatprep.subr.mxu0 0.0
    %1292 = vmatpush2.msra.mxu0 0.0
    %1293 = vmatprep.subr.mxu0 0.0
    %1294 = vmatpush2.msra.mxu0 0.0
    %1295 = vmatprep.subr.mxu0 0.0
    %1296 = vmatpush2.msra.mxu0 0.0
    %1297 = vmatprep.subr.mxu0 0.0
    %1298 = vmatpush2.msra.mxu0 0.0
    %1299 = vmatprep.subr.mxu0 0.0
    %1300 = vmatpush2.msra.mxu0 0.0
    %1301 = vmatprep.subr.mxu0 0.0
    %1302 = vmatpush2.msra.mxu0 0.0
    %1303 = vmatprep.subr.mxu0 0.0
    %1304 = vmatpush2.msra.mxu0 0.0
    %1305 = vmatprep.subr.mxu0 0.0
    %1306 = vmatpush2.msra.mxu0 0.0
    %1307 = vmatprep.subr.mxu0 0.0
    %1308 = vmatpush2.msra.mxu0 0.0
    %1309 = vmatprep.subr.mxu0 0.0
    %1310 = vmatpush2.msra.mxu0 0.0
    %1311 = vmatprep.subr.mxu0 0.0
    %1312 = vmatpush2.msra.mxu0 0.0
    %1313 = vmatprep.mubr.f32.mxu0 0.0
    %1314 = vmatmul.mubr.f32.gmra.mxu0 %v1248
    %v1315 = vpop.f32.mrf.mxu0
    %v1316 = vadd.f32 %v1075, %v1315
    %v1317 = vpop.f32.mrf.mxu0
    %v1318 = vadd.f32 %v1079, %v1317
    %1319 = vdwg.mxu0
    %1320 = vmatprep.subr.mxu0 0.0
    %1321 = vmatpush1.msra.mxu0 %v1069
    %1322 = vmatprep.subr.mxu0 0.0
    %1323 = vmatpush1.msra.mxu0 %v1066
    %1324 = vmatprep.subr.mxu0 0.0
    %1325 = vmatpush1.msra.mxu0 %v1063
    %1326 = vmatprep.subr.mxu0 0.0
    %1327 = vmatpush1.msra.mxu0 %v1060
    %1328 = vmatprep.subr.mxu0 0.0
    %1329 = vmatpush1.msra.mxu0 %v1057
    %1330 = vmatprep.subr.mxu0 0.0
    %1331 = vmatpush1.msra.mxu0 %v1054
    %1332 = vmatprep.subr.mxu0 0.0
    %1333 = vmatpush1.msra.mxu0 %v1051
    %1334 = vmatprep.subr.mxu0 0.0
    %1335 = vmatpush1.msra.mxu0 %v1048
    %1336 = vmatprep.subr.mxu0 0.0
    %1337 = vmatpush1.msra.mxu0 %v1045
    %1338 = vmatprep.subr.mxu0 0.0
    %1339 = vmatpush1.msra.mxu0 %v1042
    %1340 = vmatprep.subr.mxu0 0.0
    %1341 = vmatpush1.msra.mxu0 %v1039
    %1342 = vmatprep.subr.mxu0 0.0
    %1343 = vmatpush1.msra.mxu0 %v1036
    %1344 = vmatprep.subr.mxu0 0.0
    %1345 = vmatpush1.msra.mxu0 %v1033
    %1346 = vmatprep.subr.mxu0 0.0
    %1347 = vmatpush1.msra.mxu0 %v1030
    %1348 = vmatprep.subr.mxu0 0.0
    %1349 = vmatpush1.msra.mxu0 %v1027
    %1350 = vmatprep.subr.mxu0 0.0
    %1351 = vmatpush1.msra.mxu0 %v1024
    %1352 = vmatprep.subr.mxu0 0.0
    %1353 = vmatpush2.msra.mxu0 0.0
    %1354 = vmatprep.subr.mxu0 0.0
    %1355 = vmatpush2.msra.mxu0 0.0
    %1356 = vmatprep.subr.mxu0 0.0
    %1357 = vmatpush2.msra.mxu0 0.0
    %1358 = vmatprep.subr.mxu0 0.0
    %1359 = vmatpush2.msra.mxu0 0.0
    %1360 = vmatprep.subr.mxu0 0.0
    %1361 = vmatpush2.msra.mxu0 0.0
    %1362 = vmatprep.subr.mxu0 0.0
    %1363 = vmatpush2.msra.mxu0 0.0
    %1364 = vmatprep.subr.mxu0 0.0
    %1365 = vmatpush2.msra.mxu0 0.0
    %1366 = vmatprep.subr.mxu0 0.0
    %1367 = vmatpush2.msra.mxu0 0.0
    %1368 = vmatprep.subr.mxu0 0.0
    %1369 = vmatpush2.msra.mxu0 0.0
    %1370 = vmatprep.subr.mxu0 0.0
    %1371 = vmatpush2.msra.mxu0 0.0
    %1372 = vmatprep.subr.mxu0 0.0
    %1373 = vmatpush2.msra.mxu0 0.0
    %1374 = vmatprep.subr.mxu0 0.0
    %1375 = vmatpush2.msra.mxu0 0.0
    %1376 = vmatprep.subr.mxu0 0.0
    %1377 = vmatpush2.msra.mxu0 0.0
    %1378 = vmatprep.subr.mxu0 0.0
    %1379 = vmatpush2.msra.mxu0 0.0
    %1380 = vmatprep.subr.mxu0 0.0
    %1381 = vmatpush2.msra.mxu0 0.0
    %1382 = vmatprep.subr.mxu0 0.0
    %1383 = vmatpush2.msra.mxu0 0.0
    %1384 = vmatprep.mubr.f32.mxu0 0.0
    %1385 = vmatmul.mubr.f32.gmra.mxu0 %v1248
    %v1386 = vpop.f32.mrf.mxu0
    %v1387 = vadd.f32 %v1083, %v1386
    %v1388 = vpop.f32.mrf.mxu0
    %1389 = vdwg.mxu0
    %v1391 = vrot.slane %v1316, 6
    %v1393 = vadd.f32 %v973, %v1391
    %v1394 = vxor.u32 %v1393, 2147483648
    %v1395 = vmul.f32 %v1394, 1.442695
    %v1396 = vpow.pop %v1395
    %v1397 = vadd.f32 %v1396, 1.0
    %v1398 = vrcp.pop %v1397
    %v1399 = vmul.f32 1.0, %v1398
    %v1401 = vrot.slane %v1318, 6
    %v1403 = vadd.f32 %v975, %v1401
    %v1404 = vxor.u32 %v1403, 2147483648
    %v1405 = vmul.f32 %v1404, 1.442695
    %v1406 = vpow.pop %v1405
    %v1407 = vadd.f32 %v1406, 1.0
    %v1408 = vrcp.pop %v1407
    %v1409 = vmul.f32 1.0, %v1408
    %v1411 = vrot.slane %v1387, 6
    %v1413 = vmul.f32 %v1399, %v1411
    %v1414 = vadd.f32 %v1016, %v1413
    %v1415 = vtanh.pop %v1414
    %v1416 = vsub.f32 1.0, %v1409
    %v1417 = vmul.f32 %v1416, %v1415
    %v1419 = vrot.slane %v1248, 6
    %v1421 = vmul.f32 %v1409, %v1419
    %v1422 = vadd.f32 %v1417, %v1421
    %v1424 = vrot.slane %v1422, 2
    %1426 = vmatprep.subr.mxu0 %v1068
    %1427 = vmatpush1.msra.mxu0 %v1067
    %1428 = vmatprep.subr.mxu0 %v1065
    %1429 = vmatpush1.msra.mxu0 %v1064
    %1430 = vmatprep.subr.mxu0 %v1062
    %1431 = vmatpush1.msra.mxu0 %v1061
    %1432 = vmatprep.subr.mxu0 %v1059
    %1433 = vmatpush1.msra.mxu0 %v1058
    %1434 = vmatprep.subr.mxu0 %v1056
    %1435 = vmatpush1.msra.mxu0 %v1055
    %1436 = vmatprep.subr.mxu0 %v1053
    %1437 = vmatpush1.msra.mxu0 %v1052
    %1438 = vmatprep.subr.mxu0 %v1050
    %1439 = vmatpush1.msra.mxu0 %v1049
    %1440 = vmatprep.subr.mxu0 %v1047
    %1441 = vmatpush1.msra.mxu0 %v1046
    %1442 = vmatprep.subr.mxu0 %v1044
    %1443 = vmatpush1.msra.mxu0 %v1043
    %1444 = vmatprep.subr.mxu0 %v1041
    %1445 = vmatpush1.msra.mxu0 %v1040
    %1446 = vmatprep.subr.mxu0 %v1038
    %1447 = vmatpush1.msra.mxu0 %v1037
    %1448 = vmatprep.subr.mxu0 %v1035
    %1449 = vmatpush1.msra.mxu0 %v1034
    %1450 = vmatprep.subr.mxu0 %v1032
    %1451 = vmatpush1.msra.mxu0 %v1031
    %1452 = vmatprep.subr.mxu0 %v1029
    %1453 = vmatpush1.msra.mxu0 %v1028
    %1454 = vmatprep.subr.mxu0 %v1026
    %1455 = vmatpush1.msra.mxu0 %v1025
    %1456 = vmatprep.subr.mxu0 %v1023
    %1457 = vmatpush1.msra.mxu0 %v1022
    %1458 = vmatprep.subr.mxu0 0.0
    %1459 = vmatpush2.msra.mxu0 0.0
    %1460 = vmatprep.subr.mxu0 0.0
    %1461 = vmatpush2.msra.mxu0 0.0
    %1462 = vmatprep.subr.mxu0 0.0
    %1463 = vmatpush2.msra.mxu0 0.0
    %1464 = vmatprep.subr.mxu0 0.0
    %1465 = vmatpush2.msra.mxu0 0.0
    %1466 = vmatprep.subr.mxu0 0.0
    %1467 = vmatpush2.msra.mxu0 0.0
    %1468 = vmatprep.subr.mxu0 0.0
    %1469 = vmatpush2.msra.mxu0 0.0
    %1470 = vmatprep.subr.mxu0 0.0
    %1471 = vmatpush2.msra.mxu0 0.0
    %1472 = vmatprep.subr.mxu0 0.0
    %1473 = vmatpush2.msra.mxu0 0.0
    %1474 = vmatprep.subr.mxu0 0.0
    %1475 = vmatpush2.msra.mxu0 0.0
    %1476 = vmatprep.subr.mxu0 0.0
    %1477 = vmatpush2.msra.mxu0 0.0
    %1478 = vmatprep.subr.mxu0 0.0
    %1479 = vmatpush2.msra.mxu0 0.0
    %1480 = vmatprep.subr.mxu0 0.0
    %1481 = vmatpush2.msra.mxu0 0.0
    %1482 = vmatprep.subr.mxu0 0.0
    %1483 = vmatpush2.msra.mxu0 0.0
    %1484 = vmatprep.subr.mxu0 0.0
    %1485 = vmatpush2.msra.mxu0 0.0
    %1486 = vmatprep.subr.mxu0 0.0
    %1487 = vmatpush2.msra.mxu0 0.0
    %1488 = vmatprep.subr.mxu0 0.0
    %1489 = vmatpush2.msra.mxu0 0.0
    %1490 = vmatprep.mubr.f32.mxu0 0.0
    %1491 = vmatmul.mubr.f32.gmra.mxu0 %v1424
    %v1492 = vpop.f32.mrf.mxu0
    %v1493 = vadd.f32 %v1075, %v1492
    %v1494 = vpop.f32.mrf.mxu0
    %v1495 = vadd.f32 %v1079, %v1494
    %1496 = vdwg.mxu0
    %1497 = vmatprep.subr.mxu0 0.0
    %1498 = vmatpush1.msra.mxu0 %v1069
    %1499 = vmatprep.subr.mxu0 0.0
    %1500 = vmatpush1.msra.mxu0 %v1066
    %1501 = vmatprep.subr.mxu0 0.0
    %1502 = vmatpush1.msra.mxu0 %v1063
    %1503 = vmatprep.subr.mxu0 0.0
    %1504 = vmatpush1.msra.mxu0 %v1060
    %1505 = vmatprep.subr.mxu0 0.0
    %1506 = vmatpush1.msra.mxu0 %v1057
    %1507 = vmatprep.subr.mxu0 0.0
    %1508 = vmatpush1.msra.mxu0 %v1054
    %1509 = vmatprep.subr.mxu0 0.0
    %1510 = vmatpush1.msra.mxu0 %v1051
    %1511 = vmatprep.subr.mxu0 0.0
    %1512 = vmatpush1.msra.mxu0 %v1048
    %1513 = vmatprep.subr.mxu0 0.0
    %1514 = vmatpush1.msra.mxu0 %v1045
    %1515 = vmatprep.subr.mxu0 0.0
    %1516 = vmatpush1.msra.mxu0 %v1042
    %1517 = vmatprep.subr.mxu0 0.0
    %1518 = vmatpush1.msra.mxu0 %v1039
    %1519 = vmatprep.subr.mxu0 0.0
    %1520 = vmatpush1.msra.mxu0 %v1036
    %1521 = vmatprep.subr.mxu0 0.0
    %1522 = vmatpush1.msra.mxu0 %v1033
    %1523 = vmatprep.subr.mxu0 0.0
    %1524 = vmatpush1.msra.mxu0 %v1030
    %1525 = vmatprep.subr.mxu0 0.0
    %1526 = vmatpush1.msra.mxu0 %v1027
    %1527 = vmatprep.subr.mxu0 0.0
    %1528 = vmatpush1.msra.mxu0 %v1024
    %1529 = vmatprep.subr.mxu0 0.0
    %1530 = vmatpush2.msra.mxu0 0.0
    %1531 = vmatprep.subr.mxu0 0.0
    %1532 = vmatpush2.msra.mxu0 0.0
    %1533 = vmatprep.subr.mxu0 0.0
    %1534 = vmatpush2.msra.mxu0 0.0
    %1535 = vmatprep.subr.mxu0 0.0
    %1536 = vmatpush2.msra.mxu0 0.0
    %1537 = vmatprep.subr.mxu0 0.0
    %1538 = vmatpush2.msra.mxu0 0.0
    %1539 = vmatprep.subr.mxu0 0.0
    %1540 = vmatpush2.msra.mxu0 0.0
    %1541 = vmatprep.subr.mxu0 0.0
    %1542 = vmatpush2.msra.mxu0 0.0
    %1543 = vmatprep.subr.mxu0 0.0
    %1544 = vmatpush2.msra.mxu0 0.0
    %1545 = vmatprep.subr.mxu0 0.0
    %1546 = vmatpush2.msra.mxu0 0.0
    %1547 = vmatprep.subr.mxu0 0.0
    %1548 = vmatpush2.msra.mxu0 0.0
    %1549 = vmatprep.subr.mxu0 0.0
    %1550 = vmatpush2.msra.mxu0 0.0
    %1551 = vmatprep.subr.mxu0 0.0
    %1552 = vmatpush2.msra.mxu0 0.0
    %1553 = vmatprep.subr.mxu0 0.0
    %1554 = vmatpush2.msra.mxu0 0.0
    %1555 = vmatprep.subr.mxu0 0.0
    %1556 = vmatpush2.msra.mxu0 0.0
    %1557 = vmatprep.subr.mxu0 0.0
    %1558 = vmatpush2.msra.mxu0 0.0
    %1559 = vmatprep.subr.mxu0 0.0
    %1560 = vmatpush2.msra.mxu0 0.0
    %1561 = vmatprep.mubr.f32.mxu0 0.0
    %1562 = vmatmul.mubr.f32.gmra.mxu0 %v1424
    %v1563 = vpop.f32.mrf.mxu0
    %v1564 = vadd.f32 %v1083, %v1563
    %v1565 = vpop.f32.mrf.mxu0
    %1566 = vdwg.mxu0
    %v1568 = vrot.slane %v1493, 4
    %v1570 = vadd.f32 %v973, %v1568
    %v1571 = vxor.u32 %v1570, 2147483648
    %v1572 = vmul.f32 %v1571, 1.442695
    %v1573 = vpow.pop %v1572
    %v1574 = vadd.f32 %v1573, 1.0
    %v1575 = vrcp.pop %v1574
    %v1576 = vmul.f32 1.0, %v1575
    %v1578 = vrot.slane %v1495, 4
    %v1580 = vadd.f32 %v975, %v1578
    %v1581 = vxor.u32 %v1580, 2147483648
    %v1582 = vmul.f32 %v1581, 1.442695
    %v1583 = vpow.pop %v1582
    %v1584 = vadd.f32 %v1583, 1.0
    %v1585 = vrcp.pop %v1584
    %v1586 = vmul.f32 1.0, %v1585
    %v1588 = vrot.slane %v1564, 4
    %v1590 = vmul.f32 %v1576, %v1588
    %v1591 = vadd.f32 %v1016, %v1590
    %v1592 = vtanh.pop %v1591
    %v1593 = vsub.f32 1.0, %v1586
    %v1594 = vmul.f32 %v1593, %v1592
    %v1595 = vrot.slane %v1422, 6
    %v1597 = vmul.f32 %v1586, %v1595
    %v1598 = vadd.f32 %v1594, %v1597
    %v1600 = vrot.slane %v1598, 4
    %1602 = vmatprep.subr.mxu0 %v1068
    %1603 = vmatpush1.msra.mxu0 %v1067
    %1604 = vmatprep.subr.mxu0 %v1065
    %1605 = vmatpush1.msra.mxu0 %v1064
    %1606 = vmatprep.subr.mxu0 %v1062
    %1607 = vmatpush1.msra.mxu0 %v1061
    %1608 = vmatprep.subr.mxu0 %v1059
    %1609 = vmatpush1.msra.mxu0 %v1058
    %1610 = vmatprep.subr.mxu0 %v1056
    %1611 = vmatpush1.msra.mxu0 %v1055
    %1612 = vmatprep.subr.mxu0 %v1053
    %1613 = vmatpush1.msra.mxu0 %v1052
    %1614 = vmatprep.subr.mxu0 %v1050
    %1615 = vmatpush1.msra.mxu0 %v1049
    %1616 = vmatprep.subr.mxu0 %v1047
    %1617 = vmatpush1.msra.mxu0 %v1046
    %1618 = vmatprep.subr.mxu0 %v1044
    %1619 = vmatpush1.msra.mxu0 %v1043
    %1620 = vmatprep.subr.mxu0 %v1041
    %1621 = vmatpush1.msra.mxu0 %v1040
    %1622 = vmatprep.subr.mxu0 %v1038
    %1623 = vmatpush1.msra.mxu0 %v1037
    %1624 = vmatprep.subr.mxu0 %v1035
    %1625 = vmatpush1.msra.mxu0 %v1034
    %1626 = vmatprep.subr.mxu0 %v1032
    %1627 = vmatpush1.msra.mxu0 %v1031
    %1628 = vmatprep.subr.mxu0 %v1029
    %1629 = vmatpush1.msra.mxu0 %v1028
    %1630 = vmatprep.subr.mxu0 %v1026
    %1631 = vmatpush1.msra.mxu0 %v1025
    %1632 = vmatprep.subr.mxu0 %v1023
    %1633 = vmatpush1.msra.mxu0 %v1022
    %1634 = vmatprep.subr.mxu0 0.0
    %1635 = vmatpush2.msra.mxu0 0.0
    %1636 = vmatprep.subr.mxu0 0.0
    %1637 = vmatpush2.msra.mxu0 0.0
    %1638 = vmatprep.subr.mxu0 0.0
    %1639 = vmatpush2.msra.mxu0 0.0
    %1640 = vmatprep.subr.mxu0 0.0
    %1641 = vmatpush2.msra.mxu0 0.0
    %1642 = vmatprep.subr.mxu0 0.0
    %1643 = vmatpush2.msra.mxu0 0.0
    %1644 = vmatprep.subr.mxu0 0.0
    %1645 = vmatpush2.msra.mxu0 0.0
    %1646 = vmatprep.subr.mxu0 0.0
    %1647 = vmatpush2.msra.mxu0 0.0
    %1648 = vmatprep.subr.mxu0 0.0
    %1649 = vmatpush2.msra.mxu0 0.0
    %1650 = vmatprep.subr.mxu0 0.0
    %1651 = vmatpush2.msra.mxu0 0.0
    %1652 = vmatprep.subr.mxu0 0.0
    %1653 = vmatpush2.msra.mxu0 0.0
    %1654 = vmatprep.subr.mxu0 0.0
    %1655 = vmatpush2.msra.mxu0 0.0
    %1656 = vmatprep.subr.mxu0 0.0
    %1657 = vmatpush2.msra.mxu0 0.0
    %1658 = vmatprep.subr.mxu0 0.0
    %1659 = vmatpush2.msra.mxu0 0.0
    %1660 = vmatprep.subr.mxu0 0.0
    %1661 = vmatpush2.msra.mxu0 0.0
    %1662 = vmatprep.subr.mxu0 0.0
    %1663 = vmatpush2.msra.mxu0 0.0
    %1664 = vmatprep.subr.mxu0 0.0
    %1665 = vmatpush2.msra.mxu0 0.0
    %1666 = vmatprep.mubr.f32.mxu0 0.0
    %1667 = vmatmul.mubr.f32.gmra.mxu0 %v1600
    %v1668 = vpop.f32.mrf.mxu0
    %v1669 = vadd.f32 %v1075, %v1668
    %v1670 = vpop.f32.mrf.mxu0
    %v1671 = vadd.f32 %v1079, %v1670
    %1672 = vdwg.mxu0
    %1673 = vmatprep.subr.mxu0 0.0
    %1674 = vmatpush1.msra.mxu0 %v1069
    %1675 = vmatprep.subr.mxu0 0.0
    %1676 = vmatpush1.msra.mxu0 %v1066
    %1677 = vmatprep.subr.mxu0 0.0
    %1678 = vmatpush1.msra.mxu0 %v1063
    %1679 = vmatprep.subr.mxu0 0.0
    %1680 = vmatpush1.msra.mxu0 %v1060
    %1681 = vmatprep.subr.mxu0 0.0
    %1682 = vmatpush1.msra.mxu0 %v1057
    %1683 = vmatprep.subr.mxu0 0.0
    %1684 = vmatpush1.msra.mxu0 %v1054
    %1685 = vmatprep.subr.mxu0 0.0
    %1686 = vmatpush1.msra.mxu0 %v1051
    %1687 = vmatprep.subr.mxu0 0.0
    %1688 = vmatpush1.msra.mxu0 %v1048
    %1689 = vmatprep.subr.mxu0 0.0
    %1690 = vmatpush1.msra.mxu0 %v1045
    %1691 = vmatprep.subr.mxu0 0.0
    %1692 = vmatpush1.msra.mxu0 %v1042
    %1693 = vmatprep.subr.mxu0 0.0
    %1694 = vmatpush1.msra.mxu0 %v1039
    %1695 = vmatprep.subr.mxu0 0.0
    %1696 = vmatpush1.msra.mxu0 %v1036
    %1697 = vmatprep.subr.mxu0 0.0
    %1698 = vmatpush1.msra.mxu0 %v1033
    %1699 = vmatprep.subr.mxu0 0.0
    %1700 = vmatpush1.msra.mxu0 %v1030
    %1701 = vmatprep.subr.mxu0 0.0
    %1702 = vmatpush1.msra.mxu0 %v1027
    %1703 = vmatprep.subr.mxu0 0.0
    %1704 = vmatpush1.msra.mxu0 %v1024
    %1705 = vmatprep.subr.mxu0 0.0
    %1706 = vmatpush2.msra.mxu0 0.0
    %1707 = vmatprep.subr.mxu0 0.0
    %1708 = vmatpush2.msra.mxu0 0.0
    %1709 = vmatprep.subr.mxu0 0.0
    %1710 = vmatpush2.msra.mxu0 0.0
    %1711 = vmatprep.subr.mxu0 0.0
    %1712 = vmatpush2.msra.mxu0 0.0
    %1713 = vmatprep.subr.mxu0 0.0
    %1714 = vmatpush2.msra.mxu0 0.0
    %1715 = vmatprep.subr.mxu0 0.0
    %1716 = vmatpush2.msra.mxu0 0.0
    %1717 = vmatprep.subr.mxu0 0.0
    %1718 = vmatpush2.msra.mxu0 0.0
    %1719 = vmatprep.subr.mxu0 0.0
    %1720 = vmatpush2.msra.mxu0 0.0
    %1721 = vmatprep.subr.mxu0 0.0
    %1722 = vmatpush2.msra.mxu0 0.0
    %1723 = vmatprep.subr.mxu0 0.0
    %1724 = vmatpush2.msra.mxu0 0.0
    %1725 = vmatprep.subr.mxu0 0.0
    %1726 = vmatpush2.msra.mxu0 0.0
    %1727 = vmatprep.subr.mxu0 0.0
    %1728 = vmatpush2.msra.mxu0 0.0
    %1729 = vmatprep.subr.mxu0 0.0
    %1730 = vmatpush2.msra.mxu0 0.0
    %1731 = vmatprep.subr.mxu0 0.0
    %1732 = vmatpush2.msra.mxu0 0.0
    %1733 = vmatprep.subr.mxu0 0.0
    %1734 = vmatpush2.msra.mxu0 0.0
    %1735 = vmatprep.subr.mxu0 0.0
    %1736 = vmatpush2.msra.mxu0 0.0
    %1737 = vmatprep.mubr.f32.mxu0 0.0
    %1738 = vmatmul.mubr.f32.gmra.mxu0 %v1600
    %v1739 = vpop.f32.mrf.mxu0
    %v1740 = vadd.f32 %v1083, %v1739
    %v1741 = vpop.f32.mrf.mxu0
    %1742 = vdwg.mxu0
    %v1744 = vrot.slane %v1669, 2
    %v1746 = vadd.f32 %v973, %v1744
    %v1747 = vxor.u32 %v1746, 2147483648
    %v1748 = vmul.f32 %v1747, 1.442695
    %v1749 = vpow.pop %v1748
    %v1750 = vadd.f32 %v1749, 1.0
    %v1751 = vrcp.pop %v1750
    %v1752 = vmul.f32 1.0, %v1751
    %v1754 = vrot.slane %v1671, 2
    %v1756 = vadd.f32 %v975, %v1754
    %v1757 = vxor.u32 %v1756, 2147483648
    %v1758 = vmul.f32 %v1757, 1.442695
    %v1759 = vpow.pop %v1758
    %v1760 = vadd.f32 %v1759, 1.0
    %v1761 = vrcp.pop %v1760
    %v1762 = vmul.f32 1.0, %v1761
    %v1764 = vrot.slane %v1740, 2
    %v1766 = vmul.f32 %v1752, %v1764
    %v1767 = vadd.f32 %v1016, %v1766
    %v1768 = vtanh.pop %v1767
    %v1769 = vsub.f32 1.0, %v1762
    %v1770 = vmul.f32 %v1769, %v1768
    %v1771 = vrot.slane %v1598, 6
    %v1773 = vmul.f32 %v1762, %v1771
    %v1774 = vadd.f32 %v1770, %v1773
    %v1776 = vrot.slane %v1774, 6
    %1778 = vmatprep.subr.mxu0 %v1068
    %1779 = vmatpush1.msra.mxu0 %v1067
    %1780 = vmatprep.subr.mxu0 %v1065
    %1781 = vmatpush1.msra.mxu0 %v1064
    %1782 = vmatprep.subr.mxu0 %v1062
    %1783 = vmatpush1.msra.mxu0 %v1061
    %1784 = vmatprep.subr.mxu0 %v1059
    %1785 = vmatpush1.msra.mxu0 %v1058
    %1786 = vmatprep.subr.mxu0 %v1056
    %1787 = vmatpush1.msra.mxu0 %v1055
    %1788 = vmatprep.subr.mxu0 %v1053
    %1789 = vmatpush1.msra.mxu0 %v1052
    %1790 = vmatprep.subr.mxu0 %v1050
    %1791 = vmatpush1.msra.mxu0 %v1049
    %1792 = vmatprep.subr.mxu0 %v1047
    %1793 = vmatpush1.msra.mxu0 %v1046
    %1794 = vmatprep.subr.mxu0 %v1044
    %1795 = vmatpush1.msra.mxu0 %v1043
    %1796 = vmatprep.subr.mxu0 %v1041
    %1797 = vmatpush1.msra.mxu0 %v1040
    %1798 = vmatprep.subr.mxu0 %v1038
    %1799 = vmatpush1.msra.mxu0 %v1037
    %1800 = vmatprep.subr.mxu0 %v1035
    %1801 = vmatpush1.msra.mxu0 %v1034
    %1802 = vmatprep.subr.mxu0 %v1032
    %1803 = vmatpush1.msra.mxu0 %v1031
    %1804 = vmatprep.subr.mxu0 %v1029
    %1805 = vmatpush1.msra.mxu0 %v1028
    %1806 = vmatprep.subr.mxu0 %v1026
    %1807 = vmatpush1.msra.mxu0 %v1025
    %1808 = vmatprep.subr.mxu0 %v1023
    %1809 = vmatpush1.msra.mxu0 %v1022
    %1810 = vmatprep.subr.mxu0 0.0
    %1811 = vmatpush2.msra.mxu0 0.0
    %1812 = vmatprep.subr.mxu0 0.0
    %1813 = vmatpush2.msra.mxu0 0.0
    %1814 = vmatprep.subr.mxu0 0.0
    %1815 = vmatpush2.msra.mxu0 0.0
    %1816 = vmatprep.subr.mxu0 0.0
    %1817 = vmatpush2.msra.mxu0 0.0
    %1818 = vmatprep.subr.mxu0 0.0
    %1819 = vmatpush2.msra.mxu0 0.0
    %1820 = vmatprep.subr.mxu0 0.0
    %1821 = vmatpush2.msra.mxu0 0.0
    %1822 = vmatprep.subr.mxu0 0.0
    %1823 = vmatpush2.msra.mxu0 0.0
    %1824 = vmatprep.subr.mxu0 0.0
    %1825 = vmatpush2.msra.mxu0 0.0
    %1826 = vmatprep.subr.mxu0 0.0
    %1827 = vmatpush2.msra.mxu0 0.0
    %1828 = vmatprep.subr.mxu0 0.0
    %1829 = vmatpush2.msra.mxu0 0.0
    %1830 = vmatprep.subr.mxu0 0.0
    %1831 = vmatpush2.msra.mxu0 0.0
    %1832 = vmatprep.subr.mxu0 0.0
    %1833 = vmatpush2.msra.mxu0 0.0
    %1834 = vmatprep.subr.mxu0 0.0
    %1835 = vmatpush2.msra.mxu0 0.0
    %1836 = vmatprep.subr.mxu0 0.0
    %1837 = vmatpush2.msra.mxu0 0.0
    %1838 = vmatprep.subr.mxu0 0.0
    %1839 = vmatpush2.msra.mxu0 0.0
    %1840 = vmatprep.subr.mxu0 0.0
    %1841 = vmatpush2.msra.mxu0 0.0
    %1842 = vmatprep.mubr.f32.mxu0 0.0
    %1843 = vmatmul.mubr.f32.gmra.mxu0 %v1776
    %v1844 = vpop.f32.mrf.mxu0
    %v1845 = vadd.f32 %v1075, %v1844
    %v1846 = vpop.f32.mrf.mxu0
    %v1847 = vadd.f32 %v1079, %v1846
    %1848 = vdwg.mxu0
    %1849 = vmatprep.subr.mxu0 0.0
    %1850 = vmatpush1.msra.mxu0 %v1069
    %1851 = vmatprep.subr.mxu0 0.0
    %1852 = vmatpush1.msra.mxu0 %v1066
    %1853 = vmatprep.subr.mxu0 0.0
    %1854 = vmatpush1.msra.mxu0 %v1063
    %1855 = vmatprep.subr.mxu0 0.0
    %1856 = vmatpush1.msra.mxu0 %v1060
    %1857 = vmatprep.subr.mxu0 0.0
    %1858 = vmatpush1.msra.mxu0 %v1057
    %1859 = vmatprep.subr.mxu0 0.0
    %1860 = vmatpush1.msra.mxu0 %v1054
    %1861 = vmatprep.subr.mxu0 0.0
    %1862 = vmatpush1.msra.mxu0 %v1051
    %1863 = vmatprep.subr.mxu0 0.0
    %1864 = vmatpush1.msra.mxu0 %v1048
    %1865 = vmatprep.subr.mxu0 0.0
    %1866 = vmatpush1.msra.mxu0 %v1045
    %1867 = vmatprep.subr.mxu0 0.0
    %1868 = vmatpush1.msra.mxu0 %v1042
    %1869 = vmatprep.subr.mxu0 0.0
    %1870 = vmatpush1.msra.mxu0 %v1039
    %1871 = vmatprep.subr.mxu0 0.0
    %1872 = vmatpush1.msra.mxu0 %v1036
    %1873 = vmatprep.subr.mxu0 0.0
    %1874 = vmatpush1.msra.mxu0 %v1033
    %1875 = vmatprep.subr.mxu0 0.0
    %1876 = vmatpush1.msra.mxu0 %v1030
    %1877 = vmatprep.subr.mxu0 0.0
    %1878 = vmatpush1.msra.mxu0 %v1027
    %1879 = vmatprep.subr.mxu0 0.0
    %1880 = vmatpush1.msra.mxu0 %v1024
    %1881 = vmatprep.subr.mxu0 0.0
    %1882 = vmatpush2.msra.mxu0 0.0
    %1883 = vmatprep.subr.mxu0 0.0
    %1884 = vmatpush2.msra.mxu0 0.0
    %1885 = vmatprep.subr.mxu0 0.0
    %1886 = vmatpush2.msra.mxu0 0.0
    %1887 = vmatprep.subr.mxu0 0.0
    %1888 = vmatpush2.msra.mxu0 0.0
    %1889 = vmatprep.subr.mxu0 0.0
    %1890 = vmatpush2.msra.mxu0 0.0
    %1891 = vmatprep.subr.mxu0 0.0
    %1892 = vmatpush2.msra.mxu0 0.0
    %1893 = vmatprep.subr.mxu0 0.0
    %1894 = vmatpush2.msra.mxu0 0.0
    %1895 = vmatprep.subr.mxu0 0.0
    %1896 = vmatpush2.msra.mxu0 0.0
    %1897 = vmatprep.subr.mxu0 0.0
    %1898 = vmatpush2.msra.mxu0 0.0
    %1899 = vmatprep.subr.mxu0 0.0
    %1900 = vmatpush2.msra.mxu0 0.0
    %1901 = vmatprep.subr.mxu0 0.0
    %1902 = vmatpush2.msra.mxu0 0.0
    %1903 = vmatprep.subr.mxu0 0.0
    %1904 = vmatpush2.msra.mxu0 0.0
    %1905 = vmatprep.subr.mxu0 0.0
    %1906 = vmatpush2.msra.mxu0 0.0
    %1907 = vmatprep.subr.mxu0 0.0
    %1908 = vmatpush2.msra.mxu0 0.0
    %1909 = vmatprep.subr.mxu0 0.0
    %1910 = vmatpush2.msra.mxu0 0.0
    %1911 = vmatprep.subr.mxu0 0.0
    %1912 = vmatpush2.msra.mxu0 0.0
    %1913 = vmatprep.mubr.f32.mxu0 0.0
    %1914 = vmatmul.mubr.f32.gmra.mxu0 %v1776
    %v1915 = vpop.f32.mrf.mxu0
    %v1916 = vadd.f32 %v1083, %v1915
    %v1917 = vpop.f32.mrf.mxu0
    %1918 = vdwg.mxu0
    %v1919 = vadd.f32 %v977, %v1845
    %v1920 = vxor.u32 %v1919, 2147483648
    %v1921 = vmul.f32 %v1920, 1.442695
    %v1922 = vpow.pop %v1921
    %v1923 = vadd.f32 %v1922, 1.0
    %v1924 = vrcp.pop %v1923
    %v1925 = vmul.f32 1.0, %v1924
    %v1926 = vadd.f32 %v979, %v1847
    %v1927 = vxor.u32 %v1926, 2147483648
    %v1928 = vmul.f32 %v1927, 1.442695
    %v1929 = vpow.pop %v1928
    %v1930 = vadd.f32 %v1929, 1.0
    %v1931 = vrcp.pop %v1930
    %v1932 = vmul.f32 1.0, %v1931
    %v1933 = vmul.f32 %v1925, %v1916
    %v1934 = vadd.f32 %v1019, %v1933
    %v1935 = vtanh.pop %v1934
    %v1936 = vsub.f32 1.0, %v1932
    %v1937 = vmul.f32 %v1936, %v1935
    %v1938 = vmul.f32 %v1932, %v1776
    %v1939 = vadd.f32 %v1937, %v1938
    %1940 = vmatprep.subr.mxu0 %v1068
    %1941 = vmatpush1.msra.mxu0 %v1067
    %1942 = vmatprep.subr.mxu0 %v1065
    %1943 = vmatpush1.msra.mxu0 %v1064
    %1944 = vmatprep.subr.mxu0 %v1062
    %1945 = vmatpush1.msra.mxu0 %v1061
    %1946 = vmatprep.subr.mxu0 %v1059
    %1947 = vmatpush1.msra.mxu0 %v1058
    %1948 = vmatprep.subr.mxu0 %v1056
    %1949 = vmatpush1.msra.mxu0 %v1055
    %1950 = vmatprep.subr.mxu0 %v1053
    %1951 = vmatpush1.msra.mxu0 %v1052
    %1952 = vmatprep.subr.mxu0 %v1050
    %1953 = vmatpush1.msra.mxu0 %v1049
    %1954 = vmatprep.subr.mxu0 %v1047
    %1955 = vmatpush1.msra.mxu0 %v1046
    %1956 = vmatprep.subr.mxu0 %v1044
    %1957 = vmatpush1.msra.mxu0 %v1043
    %1958 = vmatprep.subr.mxu0 %v1041
    %1959 = vmatpush1.msra.mxu0 %v1040
    %1960 = vmatprep.subr.mxu0 %v1038
    %1961 = vmatpush1.msra.mxu0 %v1037
    %1962 = vmatprep.subr.mxu0 %v1035
    %1963 = vmatpush1.msra.mxu0 %v1034
    %1964 = vmatprep.subr.mxu0 %v1032
    %1965 = vmatpush1.msra.mxu0 %v1031
    %1966 = vmatprep.subr.mxu0 %v1029
    %1967 = vmatpush1.msra.mxu0 %v1028
    %1968 = vmatprep.subr.mxu0 %v1026
    %1969 = vmatpush1.msra.mxu0 %v1025
    %1970 = vmatprep.subr.mxu0 %v1023
    %1971 = vmatpush1.msra.mxu0 %v1022
    %1972 = vmatprep.subr.mxu0 0.0
    %1973 = vmatpush2.msra.mxu0 0.0
    %1974 = vmatprep.subr.mxu0 0.0
    %1975 = vmatpush2.msra.mxu0 0.0
    %1976 = vmatprep.subr.mxu0 0.0
    %1977 = vmatpush2.msra.mxu0 0.0
    %1978 = vmatprep.subr.mxu0 0.0
    %1979 = vmatpush2.msra.mxu0 0.0
    %1980 = vmatprep.subr.mxu0 0.0
    %1981 = vmatpush2.msra.mxu0 0.0
    %1982 = vmatprep.subr.mxu0 0.0
    %1983 = vmatpush2.msra.mxu0 0.0
    %1984 = vmatprep.subr.mxu0 0.0
    %1985 = vmatpush2.msra.mxu0 0.0
    %1986 = vmatprep.subr.mxu0 0.0
    %1987 = vmatpush2.msra.mxu0 0.0
    %1988 = vmatprep.subr.mxu0 0.0
    %1989 = vmatpush2.msra.mxu0 0.0
    %1990 = vmatprep.subr.mxu0 0.0
    %1991 = vmatpush2.msra.mxu0 0.0
    %1992 = vmatprep.subr.mxu0 0.0
    %1993 = vmatpush2.msra.mxu0 0.0
    %1994 = vmatprep.subr.mxu0 0.0
    %1995 = vmatpush2.msra.mxu0 0.0
    %1996 = vmatprep.subr.mxu0 0.0
    %1997 = vmatpush2.msra.mxu0 0.0
    %1998 = vmatprep.subr.mxu0 0.0
    %1999 = vmatpush2.msra.mxu0 0.0
    %2000 = vmatprep.subr.mxu0 0.0
    %2001 = vmatpush2.msra.mxu0 0.0
    %2002 = vmatprep.subr.mxu0 0.0
    %2003 = vmatpush2.msra.mxu0 0.0
    %2004 = vmatprep.mubr.f32.mxu0 0.0
    %2005 = vmatmul.mubr.f32.gmra.mxu0 %v1939
    %v2006 = vpop.f32.mrf.mxu0
    %v2007 = vadd.f32 %v1075, %v2006
    %v2008 = vpop.f32.mrf.mxu0
    %v2009 = vadd.f32 %v1079, %v2008
    %2010 = vdwg.mxu0
    %2011 = vmatprep.subr.mxu0 0.0
    %2012 = vmatpush1.msra.mxu0 %v1069
    %2013 = vmatprep.subr.mxu0 0.0
    %2014 = vmatpush1.msra.mxu0 %v1066
    %2015 = vmatprep.subr.mxu0 0.0
    %2016 = vmatpush1.msra.mxu0 %v1063
    %2017 = vmatprep.subr.mxu0 0.0
    %2018 = vmatpush1.msra.mxu0 %v1060
    %2019 = vmatprep.subr.mxu0 0.0
    %2020 = vmatpush1.msra.mxu0 %v1057
    %2021 = vmatprep.subr.mxu0 0.0
    %2022 = vmatpush1.msra.mxu0 %v1054
    %2023 = vmatprep.subr.mxu0 0.0
    %2024 = vmatpush1.msra.mxu0 %v1051
    %2025 = vmatprep.subr.mxu0 0.0
    %2026 = vmatpush1.msra.mxu0 %v1048
    %2027 = vmatprep.subr.mxu0 0.0
    %2028 = vmatpush1.msra.mxu0 %v1045
    %2029 = vmatprep.subr.mxu0 0.0
    %2030 = vmatpush1.msra.mxu0 %v1042
    %2031 = vmatprep.subr.mxu0 0.0
    %2032 = vmatpush1.msra.mxu0 %v1039
    %2033 = vmatprep.subr.mxu0 0.0
    %2034 = vmatpush1.msra.mxu0 %v1036
    %2035 = vmatprep.subr.mxu0 0.0
    %2036 = vmatpush1.msra.mxu0 %v1033
    %2037 = vmatprep.subr.mxu0 0.0
    %2038 = vmatpush1.msra.mxu0 %v1030
    %2039 = vmatprep.subr.mxu0 0.0
    %2040 = vmatpush1.msra.mxu0 %v1027
    %2041 = vmatprep.subr.mxu0 0.0
    %2042 = vmatpush1.msra.mxu0 %v1024
    %2043 = vmatprep.subr.mxu0 0.0
    %2044 = vmatpush2.msra.mxu0 0.0
    %2045 = vmatprep.subr.mxu0 0.0
    %2046 = vmatpush2.msra.mxu0 0.0
    %2047 = vmatprep.subr.mxu0 0.0
    %2048 = vmatpush2.msra.mxu0 0.0
    %2049 = vmatprep.subr.mxu0 0.0
    %2050 = vmatpush2.msra.mxu0 0.0
    %2051 = vmatprep.subr.mxu0 0.0
    %2052 = vmatpush2.msra.mxu0 0.0
    %2053 = vmatprep.subr.mxu0 0.0
    %2054 = vmatpush2.msra.mxu0 0.0
    %2055 = vmatprep.subr.mxu0 0.0
    %2056 = vmatpush2.msra.mxu0 0.0
    %2057 = vmatprep.subr.mxu0 0.0
    %2058 = vmatpush2.msra.mxu0 0.0
    %2059 = vmatprep.subr.mxu0 0.0
    %2060 = vmatpush2.msra.mxu0 0.0
    %2061 = vmatprep.subr.mxu0 0.0
    %2062 = vmatpush2.msra.mxu0 0.0
    %2063 = vmatprep.subr.mxu0 0.0
    %2064 = vmatpush2.msra.mxu0 0.0
    %2065 = vmatprep.subr.mxu0 0.0
    %2066 = vmatpush2.msra.mxu0 0.0
    %2067 = vmatprep.subr.mxu0 0.0
    %2068 = vmatpush2.msra.mxu0 0.0
    %2069 = vmatprep.subr.mxu0 0.0
    %2070 = vmatpush2.msra.mxu0 0.0
    %2071 = vmatprep.subr.mxu0 0.0
    %2072 = vmatpush2.msra.mxu0 0.0
    %2073 = vmatprep.subr.mxu0 0.0
    %2074 = vmatpush2.msra.mxu0 0.0
    %2075 = vmatprep.mubr.f32.mxu0 0.0
    %2076 = vmatmul.mubr.f32.gmra.mxu0 %v1939
    %v2077 = vpop.f32.mrf.mxu0
    %v2078 = vadd.f32 %v1083, %v2077
    %v2079 = vpop.f32.mrf.mxu0
    %2080 = vdwg.mxu0
    %v2082 = vrot.slane %v2007, 6
    %v2084 = vadd.f32 %v977, %v2082
    %v2085 = vxor.u32 %v2084, 2147483648
    %v2086 = vmul.f32 %v2085, 1.442695
    %v2087 = vpow.pop %v2086
    %v2088 = vadd.f32 %v2087, 1.0
    %v2089 = vrcp.pop %v2088
    %v2090 = vmul.f32 1.0, %v2089
    %v2092 = vrot.slane %v2009, 6
    %v2094 = vadd.f32 %v979, %v2092
    %v2095 = vxor.u32 %v2094, 2147483648
    %v2096 = vmul.f32 %v2095, 1.442695
    %v2097 = vpow.pop %v2096
    %v2098 = vadd.f32 %v2097, 1.0
    %v2099 = vrcp.pop %v2098
    %v2100 = vmul.f32 1.0, %v2099
    %v2102 = vrot.slane %v2078, 6
    %v2104 = vmul.f32 %v2090, %v2102
    %v2105 = vadd.f32 %v1019, %v2104
    %v2106 = vtanh.pop %v2105
    %v2107 = vsub.f32 1.0, %v2100
    %v2108 = vmul.f32 %v2107, %v2106
    %v2110 = vrot.slane %v1939, 6
    %v2112 = vmul.f32 %v2100, %v2110
    %v2113 = vadd.f32 %v2108, %v2112
    %v2115 = vrot.slane %v2113, 2
    %2117 = vmatprep.subr.mxu0 %v1068
    %2118 = vmatpush1.msra.mxu0 %v1067
    %2119 = vmatprep.subr.mxu0 %v1065
    %2120 = vmatpush1.msra.mxu0 %v1064
    %2121 = vmatprep.subr.mxu0 %v1062
    %2122 = vmatpush1.msra.mxu0 %v1061
    %2123 = vmatprep.subr.mxu0 %v1059
    %2124 = vmatpush1.msra.mxu0 %v1058
    %2125 = vmatprep.subr.mxu0 %v1056
    %2126 = vmatpush1.msra.mxu0 %v1055
    %2127 = vmatprep.subr.mxu0 %v1053
    %2128 = vmatpush1.msra.mxu0 %v1052
    %2129 = vmatprep.subr.mxu0 %v1050
    %2130 = vmatpush1.msra.mxu0 %v1049
    %2131 = vmatprep.subr.mxu0 %v1047
    %2132 = vmatpush1.msra.mxu0 %v1046
    %2133 = vmatprep.subr.mxu0 %v1044
    %2134 = vmatpush1.msra.mxu0 %v1043
    %2135 = vmatprep.subr.mxu0 %v1041
    %2136 = vmatpush1.msra.mxu0 %v1040
    %2137 = vmatprep.subr.mxu0 %v1038
    %2138 = vmatpush1.msra.mxu0 %v1037
    %2139 = vmatprep.subr.mxu0 %v1035
    %2140 = vmatpush1.msra.mxu0 %v1034
    %2141 = vmatprep.subr.mxu0 %v1032
    %2142 = vmatpush1.msra.mxu0 %v1031
    %2143 = vmatprep.subr.mxu0 %v1029
    %2144 = vmatpush1.msra.mxu0 %v1028
    %2145 = vmatprep.subr.mxu0 %v1026
    %2146 = vmatpush1.msra.mxu0 %v1025
    %2147 = vmatprep.subr.mxu0 %v1023
    %2148 = vmatpush1.msra.mxu0 %v1022
    %2149 = vmatprep.subr.mxu0 0.0
    %2150 = vmatpush2.msra.mxu0 0.0
    %2151 = vmatprep.subr.mxu0 0.0
    %2152 = vmatpush2.msra.mxu0 0.0
    %2153 = vmatprep.subr.mxu0 0.0
    %2154 = vmatpush2.msra.mxu0 0.0
    %2155 = vmatprep.subr.mxu0 0.0
    %2156 = vmatpush2.msra.mxu0 0.0
    %2157 = vmatprep.subr.mxu0 0.0
    %2158 = vmatpush2.msra.mxu0 0.0
    %2159 = vmatprep.subr.mxu0 0.0
    %2160 = vmatpush2.msra.mxu0 0.0
    %2161 = vmatprep.subr.mxu0 0.0
    %2162 = vmatpush2.msra.mxu0 0.0
    %2163 = vmatprep.subr.mxu0 0.0
    %2164 = vmatpush2.msra.mxu0 0.0
    %2165 = vmatprep.subr.mxu0 0.0
    %2166 = vmatpush2.msra.mxu0 0.0
    %2167 = vmatprep.subr.mxu0 0.0
    %2168 = vmatpush2.msra.mxu0 0.0
    %2169 = vmatprep.subr.mxu0 0.0
    %2170 = vmatpush2.msra.mxu0 0.0
    %2171 = vmatprep.subr.mxu0 0.0
    %2172 = vmatpush2.msra.mxu0 0.0
    %2173 = vmatprep.subr.mxu0 0.0
    %2174 = vmatpush2.msra.mxu0 0.0
    %2175 = vmatprep.subr.mxu0 0.0
    %2176 = vmatpush2.msra.mxu0 0.0
    %2177 = vmatprep.subr.mxu0 0.0
    %2178 = vmatpush2.msra.mxu0 0.0
    %2179 = vmatprep.subr.mxu0 0.0
    %2180 = vmatpush2.msra.mxu0 0.0
    %2181 = vmatprep.mubr.f32.mxu0 0.0
    %2182 = vmatmul.mubr.f32.gmra.mxu0 %v2115
    %v2183 = vpop.f32.mrf.mxu0
    %v2184 = vadd.f32 %v1075, %v2183
    %v2185 = vpop.f32.mrf.mxu0
    %v2186 = vadd.f32 %v1079, %v2185
    %2187 = vdwg.mxu0
    %2188 = vmatprep.subr.mxu0 0.0
    %2189 = vmatpush1.msra.mxu0 %v1069
    %2190 = vmatprep.subr.mxu0 0.0
    %2191 = vmatpush1.msra.mxu0 %v1066
    %2192 = vmatprep.subr.mxu0 0.0
    %2193 = vmatpush1.msra.mxu0 %v1063
    %2194 = vmatprep.subr.mxu0 0.0
    %2195 = vmatpush1.msra.mxu0 %v1060
    %2196 = vmatprep.subr.mxu0 0.0
    %2197 = vmatpush1.msra.mxu0 %v1057
    %2198 = vmatprep.subr.mxu0 0.0
    %2199 = vmatpush1.msra.mxu0 %v1054
    %2200 = vmatprep.subr.mxu0 0.0
    %2201 = vmatpush1.msra.mxu0 %v1051
    %2202 = vmatprep.subr.mxu0 0.0
    %2203 = vmatpush1.msra.mxu0 %v1048
    %2204 = vmatprep.subr.mxu0 0.0
    %2205 = vmatpush1.msra.mxu0 %v1045
    %2206 = vmatprep.subr.mxu0 0.0
    %2207 = vmatpush1.msra.mxu0 %v1042
    %2208 = vmatprep.subr.mxu0 0.0
    %2209 = vmatpush1.msra.mxu0 %v1039
    %2210 = vmatprep.subr.mxu0 0.0
    %2211 = vmatpush1.msra.mxu0 %v1036
    %2212 = vmatprep.subr.mxu0 0.0
    %2213 = vmatpush1.msra.mxu0 %v1033
    %2214 = vmatprep.subr.mxu0 0.0
    %2215 = vmatpush1.msra.mxu0 %v1030
    %2216 = vmatprep.subr.mxu0 0.0
    %2217 = vmatpush1.msra.mxu0 %v1027
    %2218 = vmatprep.subr.mxu0 0.0
    %2219 = vmatpush1.msra.mxu0 %v1024
    %2220 = vmatprep.subr.mxu0 0.0
    %2221 = vmatpush2.msra.mxu0 0.0
    %2222 = vmatprep.subr.mxu0 0.0
    %2223 = vmatpush2.msra.mxu0 0.0
    %2224 = vmatprep.subr.mxu0 0.0
    %2225 = vmatpush2.msra.mxu0 0.0
    %2226 = vmatprep.subr.mxu0 0.0
    %2227 = vmatpush2.msra.mxu0 0.0
    %2228 = vmatprep.subr.mxu0 0.0
    %2229 = vmatpush2.msra.mxu0 0.0
    %2230 = vmatprep.subr.mxu0 0.0
    %2231 = vmatpush2.msra.mxu0 0.0
    %2232 = vmatprep.subr.mxu0 0.0
    %2233 = vmatpush2.msra.mxu0 0.0
    %2234 = vmatprep.subr.mxu0 0.0
    %2235 = vmatpush2.msra.mxu0 0.0
    %2236 = vmatprep.subr.mxu0 0.0
    %2237 = vmatpush2.msra.mxu0 0.0
    %2238 = vmatprep.subr.mxu0 0.0
    %2239 = vmatpush2.msra.mxu0 0.0
    %2240 = vmatprep.subr.mxu0 0.0
    %2241 = vmatpush2.msra.mxu0 0.0
    %2242 = vmatprep.subr.mxu0 0.0
    %2243 = vmatpush2.msra.mxu0 0.0
    %2244 = vmatprep.subr.mxu0 0.0
    %2245 = vmatpush2.msra.mxu0 0.0
    %2246 = vmatprep.subr.mxu0 0.0
    %2247 = vmatpush2.msra.mxu0 0.0
    %2248 = vmatprep.subr.mxu0 0.0
    %2249 = vmatpush2.msra.mxu0 0.0
    %2250 = vmatprep.subr.mxu0 0.0
    %2251 = vmatpush2.msra.mxu0 0.0
    %2252 = vmatprep.mubr.f32.mxu0 0.0
    %2253 = vmatmul.mubr.f32.gmra.mxu0 %v2115
    %v2254 = vpop.f32.mrf.mxu0
    %v2255 = vadd.f32 %v1083, %v2254
    %v2256 = vpop.f32.mrf.mxu0
    %2257 = vdwg.mxu0
    %v2259 = vrot.slane %v2184, 4
    %v2261 = vadd.f32 %v977, %v2259
    %v2262 = vxor.u32 %v2261, 2147483648
    %v2263 = vmul.f32 %v2262, 1.442695
    %v2264 = vpow.pop %v2263
    %v2265 = vadd.f32 %v2264, 1.0
    %v2266 = vrcp.pop %v2265
    %v2267 = vmul.f32 1.0, %v2266
    %v2269 = vrot.slane %v2186, 4
    %v2271 = vadd.f32 %v979, %v2269
    %v2272 = vxor.u32 %v2271, 2147483648
    %v2273 = vmul.f32 %v2272, 1.442695
    %v2274 = vpow.pop %v2273
    %v2275 = vadd.f32 %v2274, 1.0
    %v2276 = vrcp.pop %v2275
    %v2277 = vmul.f32 1.0, %v2276
    %v2279 = vrot.slane %v2255, 4
    %v2281 = vmul.f32 %v2267, %v2279
    %v2282 = vadd.f32 %v1019, %v2281
    %v2283 = vtanh.pop %v2282
    %v2284 = vsub.f32 1.0, %v2277
    %v2285 = vmul.f32 %v2284, %v2283
    %v2286 = vrot.slane %v2113, 6
    %v2288 = vmul.f32 %v2277, %v2286
    %v2289 = vadd.f32 %v2285, %v2288
    %v2291 = vrot.slane %v2289, 4
    %2293 = vmatprep.subr.mxu0 %v1068
    %2294 = vmatpush1.msra.mxu0 %v1067
    %2295 = vmatprep.subr.mxu0 %v1065
    %2296 = vmatpush1.msra.mxu0 %v1064
    %2297 = vmatprep.subr.mxu0 %v1062
    %2298 = vmatpush1.msra.mxu0 %v1061
    %2299 = vmatprep.subr.mxu0 %v1059
    %2300 = vmatpush1.msra.mxu0 %v1058
    %2301 = vmatprep.subr.mxu0 %v1056
    %2302 = vmatpush1.msra.mxu0 %v1055
    %2303 = vmatprep.subr.mxu0 %v1053
    %2304 = vmatpush1.msra.mxu0 %v1052
    %2305 = vmatprep.subr.mxu0 %v1050
    %2306 = vmatpush1.msra.mxu0 %v1049
    %2307 = vmatprep.subr.mxu0 %v1047
    %2308 = vmatpush1.msra.mxu0 %v1046
    %2309 = vmatprep.subr.mxu0 %v1044
    %2310 = vmatpush1.msra.mxu0 %v1043
    %2311 = vmatprep.subr.mxu0 %v1041
    %2312 = vmatpush1.msra.mxu0 %v1040
    %2313 = vmatprep.subr.mxu0 %v1038
    %2314 = vmatpush1.msra.mxu0 %v1037
    %2315 = vmatprep.subr.mxu0 %v1035
    %2316 = vmatpush1.msra.mxu0 %v1034
    %2317 = vmatprep.subr.mxu0 %v1032
    %2318 = vmatpush1.msra.mxu0 %v1031
    %2319 = vmatprep.subr.mxu0 %v1029
    %2320 = vmatpush1.msra.mxu0 %v1028
    %2321 = vmatprep.subr.mxu0 %v1026
    %2322 = vmatpush1.msra.mxu0 %v1025
    %2323 = vmatprep.subr.mxu0 %v1023
    %2324 = vmatpush1.msra.mxu0 %v1022
    %2325 = vmatprep.subr.mxu0 0.0
    %2326 = vmatpush2.msra.mxu0 0.0
    %2327 = vmatprep.subr.mxu0 0.0
    %2328 = vmatpush2.msra.mxu0 0.0
    %2329 = vmatprep.subr.mxu0 0.0
    %2330 = vmatpush2.msra.mxu0 0.0
    %2331 = vmatprep.subr.mxu0 0.0
    %2332 = vmatpush2.msra.mxu0 0.0
    %2333 = vmatprep.subr.mxu0 0.0
    %2334 = vmatpush2.msra.mxu0 0.0
    %2335 = vmatprep.subr.mxu0 0.0
    %2336 = vmatpush2.msra.mxu0 0.0
    %2337 = vmatprep.subr.mxu0 0.0
    %2338 = vmatpush2.msra.mxu0 0.0
    %2339 = vmatprep.subr.mxu0 0.0
    %2340 = vmatpush2.msra.mxu0 0.0
    %2341 = vmatprep.subr.mxu0 0.0
    %2342 = vmatpush2.msra.mxu0 0.0
    %2343 = vmatprep.subr.mxu0 0.0
    %2344 = vmatpush2.msra.mxu0 0.0
    %2345 = vmatprep.subr.mxu0 0.0
    %2346 = vmatpush2.msra.mxu0 0.0
    %2347 = vmatprep.subr.mxu0 0.0
    %2348 = vmatpush2.msra.mxu0 0.0
    %2349 = vmatprep.subr.mxu0 0.0
    %2350 = vmatpush2.msra.mxu0 0.0
    %2351 = vmatprep.subr.mxu0 0.0
    %2352 = vmatpush2.msra.mxu0 0.0
    %2353 = vmatprep.subr.mxu0 0.0
    %2354 = vmatpush2.msra.mxu0 0.0
    %2355 = vmatprep.subr.mxu0 0.0
    %2356 = vmatpush2.msra.mxu0 0.0
    %2357 = vmatprep.mubr.f32.mxu0 0.0
    %2358 = vmatmul.mubr.f32.gmra.mxu0 %v2291
    %v2359 = vpop.f32.mrf.mxu0
    %v2360 = vadd.f32 %v1075, %v2359
    %v2361 = vpop.f32.mrf.mxu0
    %v2362 = vadd.f32 %v1079, %v2361
    %2363 = vdwg.mxu0
    %2364 = vmatprep.subr.mxu0 0.0
    %2365 = vmatpush1.msra.mxu0 %v1069
    %2366 = vmatprep.subr.mxu0 0.0
    %2367 = vmatpush1.msra.mxu0 %v1066
    %2368 = vmatprep.subr.mxu0 0.0
    %2369 = vmatpush1.msra.mxu0 %v1063
    %2370 = vmatprep.subr.mxu0 0.0
    %2371 = vmatpush1.msra.mxu0 %v1060
    %2372 = vmatprep.subr.mxu0 0.0
    %2373 = vmatpush1.msra.mxu0 %v1057
    %2374 = vmatprep.subr.mxu0 0.0
    %2375 = vmatpush1.msra.mxu0 %v1054
    %2376 = vmatprep.subr.mxu0 0.0
    %2377 = vmatpush1.msra.mxu0 %v1051
    %2378 = vmatprep.subr.mxu0 0.0
    %2379 = vmatpush1.msra.mxu0 %v1048
    %2380 = vmatprep.subr.mxu0 0.0
    %2381 = vmatpush1.msra.mxu0 %v1045
    %2382 = vmatprep.subr.mxu0 0.0
    %2383 = vmatpush1.msra.mxu0 %v1042
    %2384 = vmatprep.subr.mxu0 0.0
    %2385 = vmatpush1.msra.mxu0 %v1039
    %2386 = vmatprep.subr.mxu0 0.0
    %2387 = vmatpush1.msra.mxu0 %v1036
    %2388 = vmatprep.subr.mxu0 0.0
    %2389 = vmatpush1.msra.mxu0 %v1033
    %2390 = vmatprep.subr.mxu0 0.0
    %2391 = vmatpush1.msra.mxu0 %v1030
    %2392 = vmatprep.subr.mxu0 0.0
    %2393 = vmatpush1.msra.mxu0 %v1027
    %2394 = vmatprep.subr.mxu0 0.0
    %2395 = vmatpush1.msra.mxu0 %v1024
    %2396 = vmatprep.subr.mxu0 0.0
    %2397 = vmatpush2.msra.mxu0 0.0
    %2398 = vmatprep.subr.mxu0 0.0
    %2399 = vmatpush2.msra.mxu0 0.0
    %2400 = vmatprep.subr.mxu0 0.0
    %2401 = vmatpush2.msra.mxu0 0.0
    %2402 = vmatprep.subr.mxu0 0.0
    %2403 = vmatpush2.msra.mxu0 0.0
    %2404 = vmatprep.subr.mxu0 0.0
    %2405 = vmatpush2.msra.mxu0 0.0
    %2406 = vmatprep.subr.mxu0 0.0
    %2407 = vmatpush2.msra.mxu0 0.0
    %2408 = vmatprep.subr.mxu0 0.0
    %2409 = vmatpush2.msra.mxu0 0.0
    %2410 = vmatprep.subr.mxu0 0.0
    %2411 = vmatpush2.msra.mxu0 0.0
    %2412 = vmatprep.subr.mxu0 0.0
    %2413 = vmatpush2.msra.mxu0 0.0
    %2414 = vmatprep.subr.mxu0 0.0
    %2415 = vmatpush2.msra.mxu0 0.0
    %2416 = vmatprep.subr.mxu0 0.0
    %2417 = vmatpush2.msra.mxu0 0.0
    %2418 = vmatprep.subr.mxu0 0.0
    %2419 = vmatpush2.msra.mxu0 0.0
    %2420 = vmatprep.subr.mxu0 0.0
    %2421 = vmatpush2.msra.mxu0 0.0
    %2422 = vmatprep.subr.mxu0 0.0
    %2423 = vmatpush2.msra.mxu0 0.0
    %2424 = vmatprep.subr.mxu0 0.0
    %2425 = vmatpush2.msra.mxu0 0.0
    %2426 = vmatprep.subr.mxu0 0.0
    %2427 = vmatpush2.msra.mxu0 0.0
    %2428 = vmatprep.mubr.f32.mxu0 0.0
    %2429 = vmatmul.mubr.f32.gmra.mxu0 %v2291
    %v2430 = vpop.f32.mrf.mxu0
    %v2431 = vadd.f32 %v1083, %v2430
    %v2432 = vpop.f32.mrf.mxu0
    %2433 = vdwg.mxu0
    %v2435 = vrot.slane %v2360, 2
    %v2437 = vadd.f32 %v977, %v2435
    %v2438 = vxor.u32 %v2437, 2147483648
    %v2439 = vmul.f32 %v2438, 1.442695
    %v2440 = vpow.pop %v2439
    %v2441 = vadd.f32 %v2440, 1.0
    %v2442 = vrcp.pop %v2441
    %v2443 = vmul.f32 1.0, %v2442
    %v2445 = vrot.slane %v2362, 2
    %v2447 = vadd.f32 %v979, %v2445
    %v2448 = vxor.u32 %v2447, 2147483648
    %v2449 = vmul.f32 %v2448, 1.442695
    %v2450 = vpow.pop %v2449
    %v2451 = vadd.f32 %v2450, 1.0
    %v2452 = vrcp.pop %v2451
    %v2453 = vmul.f32 1.0, %v2452
    %v2455 = vrot.slane %v2431, 2
    %v2457 = vmul.f32 %v2443, %v2455
    %v2458 = vadd.f32 %v1019, %v2457
    %v2459 = vtanh.pop %v2458
    %v2460 = vsub.f32 1.0, %v2453
    %v2461 = vmul.f32 %v2460, %v2459
    %v2462 = vrot.slane %v2289, 6
    %v2464 = vmul.f32 %v2453, %v2462
    %v2465 = vadd.f32 %v2461, %v2464
    %2466 = vrot.lane.b32.xlu0 %v1424, 32
    %v2467 = vpop.permute.xlu0 %2466
    %2469 = vrot.lane.b32.xlu0 %v1600, 64
    %v2470 = vpop.permute.xlu0 %2469
    %2472 = vrot.lane.b32.xlu0 %v1776, 96
    %v2473 = vpop.permute.xlu0 %2472
    %2475 = vrot.lane.b32.xlu0 %v2115, 32
    %v2476 = vpop.permute.xlu0 %2475
    %2478 = vrot.lane.b32.xlu0 %v2291, 64
    %v2479 = vpop.permute.xlu0 %2478
    %v2482 = vrot.slane %v2465, 6
    %2483 = vrot.lane.b32.xlu0 %v2482, 96
    %v2484 = vpop.permute.xlu0 %2483
    %vm2486 = vcmask 261120
    %v2487 = vsel %vm2486, %v1248, %v2467
    %vm2488 = vcmask 523264
    %v2489 = vsel %vm2488, %v2487, %v2470
    %vm2490 = vcmask 785408
    %v2491 = vsel %vm2490, %v2489, %v2473
    %v2492 = vsel %vm2486, %v1939, %v2476
    %v2493 = vsel %vm2488, %v2492, %v2479
    %v2494 = vsel %vm2490, %v2493, %v2484
    %v2497 = vcombine.low %v2491, %v2494
    %v2499 = vunpack.c.l.s4 1983009808
    %v2500 = vunpack.c.0.s8 %v2499
    %v2501 = vlaneseq
    %v2502 = vshrl.u32 %v2501, 7
    %v2503 = vsub.s32 %v2500, %v2502
    %v2504 = vrot.slane %v2497, %v2503
    %2506 = vst [vmem:[#allocation11] sm:$0xf] %v2504
    // Predicated region
    $region50: #{tpu_custom_call.1} parent=1 // pred_check
      _
    $region51: #{tpu_custom_call.1} parent=1 // pred_check_branch
      %2508 = sbr.rel (0) target = $region53
    $region52: #{tpu_custom_call.1} parent=1 // pred_region
      %s2510 = ssub.s32 64, 64
      %2511 = vsyncadd [#allocation4], %s2510
      %s2513 = sshll.u32 [#allocation11], 4
      %s2514 = int_to_ptr.vmem [resolvable:$true] %s2513
      %2516 = dma.vmem_to_hbm [thread:$0]  %s2514, 64, %s7, [#allocation4]
    $region53: #{tpu_custom_call.1} parent=1 // pred_fallthru
      _
    // Predicated region
    $region54: #{tpu_custom_call.1} parent=1 // pred_check
      _
    $region55: #{tpu_custom_call.1} parent=1 // pred_check_branch
      %2518 = sbr.rel (0) target = $region57
    $region56: #{tpu_custom_call.1} parent=1 // pred_region
      %s2520 = ssub.s32 512, 512
      %2521 = vsyncadd [#allocation13], %s2520
      %s2522 = sshll.u32 [#allocation12], 4
      %s2523 = int_to_ptr.vmem [resolvable:$true] %s2522
      %2528 = dma.vmem_to_hbm [thread:$0]  %s2523, 512, %s8, [#allocation13], 256, 256, 16
    $region57: #{tpu_custom_call.1} parent=1 // pred_fallthru
      _
    // Predicated region
    $region58: #{tpu_custom_call.1} parent=1 // pred_check
      _
    $region59: #{tpu_custom_call.1} parent=1 // pred_check_branch
      %2530 = sbr.rel (0) target = $region61
    $region60: #{tpu_custom_call.1} parent=1 // pred_region
      %2531 = dma.done [#allocation4], 64
    $region61: #{tpu_custom_call.1} parent=1 // pred_fallthru
      _
    // Predicated region
    $region62: #{tpu_custom_call.1} parent=1 // pred_check
      _
    $region63: #{tpu_custom_call.1} parent=1 // pred_check_branch
      %2533 = sbr.rel (0) target = $region65
    $region64: #{tpu_custom_call.1} parent=1 // pred_region
      %2534 = dma.done [#allocation13], 512
    $region65: #{tpu_custom_call.1} parent=1 // pred_fallthru
      _
    %2535 = vsyncpa [#allocation3], 1
    %2536 = vsyncpa [#allocation6], 1
    %2537 = vsyncpa [#allocation9], 1
    %2538 = vsyncpa [#allocation4], 1
    %2539 = vsyncpa [#allocation13], 1

</llo_original>
